<compile_context>
chip_gen: v7x
topology: tpu7x:2x2x1
jax: 0.10.0
libtpu: 0.0.40
codegen_flags: <defaults>
</compile_context>

<pallas_src>
import functools

import jax
import jax.numpy as jnp
import numpy as np
from jax import lax
from jax.experimental import pallas as pl
from jax.experimental.pallas import tpu as pltpu


def _inverted_residual_kernel(
    mask_ref,       # (1, bt*HW)  int32: bit0..3 = not_top/not_bot/not_left/not_right
    x_ref,          # (bt, C, HW) input block, channels on sublanes
    w_pw_ref,       # (M2, Cin2)  bf16, BN scale folded in
    w_dw_ref,       # (M2, 9)     f32,  BN scale folded in
    w_se1t_ref,     # (M, M4)     f32,  SE squeeze weight, transposed (rows = in-channel)
    w_se2_ref,      # (M, M4)     f32,  SE excite weight (rows = out-channel)
    w_lina_ref,     # (O2, M2)    bf16, BN scale folded in (x2p half)
    w_linb_ref,     # (O2, M2)    bf16, BN scale folded in (x3 half)
    bias_cols_ref,  # (M, 2)      f32:  col0 = [b_pw ; b_dw], col1 = b_se2
    b_se1_ref,      # (1, M4)     f32
    b_lin_ref,      # (O2, 1)     f32
    out_ref,        # (bt, Cg, 2*HW)  [group0 | group1] along lanes, per image
    *, height, width, block_batch,
):
    H, W, bt = height, width, block_batch
    HW = H * W
    N = bt * HW
    M2, Cin2 = w_pw_ref.shape
    M = 2 * M2
    O2 = w_lina_ref.shape[0]
    Cg = out_ref.shape[1]

    b_pw = bias_cols_ref[0:M2, 0:1]           # (M2, 1)
    b_dw = bias_cols_ref[M2:, 0:1]            # (M2, 1)
    b_se2 = bias_cols_ref[:, 1:2]             # (M, 1)
    b_se1 = b_se1_ref[...]                    # (1, M4)
    b_lin = b_lin_ref[...]                    # (O2, 1)

    # ---- gather the x2 halves of all bt images side by side along lanes ----
    if bt == 1:
        x2f = x_ref[0, Cin2:, :]
    else:
        x2f = jnp.concatenate([x_ref[b, Cin2:, :] for b in range(bt)], axis=1)
    x2 = x2f.astype(jnp.bfloat16)             # (Cin2, N) bf16 MXU operand

    # ---- 1x1 pointwise conv (BN scale pre-folded) + bias + relu: MXU, N lanes ----
    y = jnp.dot(w_pw_ref[...], x2, preferred_element_type=jnp.float32)
    x2p = jnp.maximum(y + b_pw, 0.0)          # (M2, N) f32

    # ---- 3x3 depthwise conv, stride 1, pad 1: XLU lane rolls + precomputed masks ----
    bits = mask_ref[...]                      # (1, N) int32
    not_top = (bits & 1) != 0                 # source row h-1 in bounds
    not_bot = (bits & 2) != 0                 # source row h+1 in bounds
    not_left = (bits & 4) != 0                # source col w-1 in bounds
    not_right = (bits & 8) != 0               # source col w+1 in bounds

    w_dw = w_dw_ref[...]
    acc = jnp.zeros((M2, N), jnp.float32)
    for ky in range(3):
        for kx in range(3):
            shift = (ky - 1) * W + (kx - 1)   # flat offset of the source pixel
            if shift == 0:
                v = x2p
            else:
                v = pltpu.roll(x2p, shift=(-shift) % N, axis=1)
            m = None
            if ky == 0:
                m = not_top
            elif ky == 2:
                m = not_bot
            if kx == 0:
                m = not_left if m is None else m & not_left
            elif kx == 2:
                m = not_right if m is None else m & not_right
            if m is not None:
                v = jnp.where(m, v, 0.0)
            k = ky * 3 + kx
            acc = acc + w_dw[:, k:k + 1] * v
    x3 = acc + b_dw                            # (M2, N) f32, no activation

    # ---- SE + linear 1x1 conv + shuffled output, per image ----
    w_se1t = w_se1t_ref[...]
    w_se2 = w_se2_ref[...]
    w_lina = w_lina_ref[...].astype(jnp.float32)
    w_linb = w_linb_ref[...].astype(jnp.float32)
    inv_hw = jnp.float32(1.0 / HW)
    inv6 = jnp.float32(1.0 / 6.0)
    # (M, M) "eye" used to flip the SE scale column into a row without a transpose op
    eye = (lax.broadcasted_iota(jnp.int32, (M, M), 0)
           == lax.broadcasted_iota(jnp.int32, (M, M), 1))
    out_dtype = out_ref.dtype

    for b in range(bt):
        lo, hi = b * HW, (b + 1) * HW
        x2p_b = x2p[:, lo:hi]                               # (M2, HW)
        x3_b = x3[:, lo:hi]

        # SE: global avg pool -> 1x1 -> relu -> 1x1 -> hardsigmoid  (VPU/XLU only)
        pa = jnp.sum(x2p_b, axis=1, keepdims=True) * inv_hw   # (M2, 1)
        pb = jnp.sum(x3_b, axis=1, keepdims=True) * inv_hw    # (M2, 1)
        pool = jnp.concatenate([pa, pb], axis=0)               # (M, 1)
        h_se = jnp.sum(w_se1t * pool, axis=0, keepdims=True) + b_se1   # (1, M4)
        h_se = jnp.maximum(h_se, 0.0)
        s_col = jnp.sum(w_se2 * h_se, axis=1, keepdims=True) + b_se2   # (M, 1)
        s_col = jnp.clip(s_col * inv6 + 0.5, 0.0, 1.0)                  # hardsigmoid
        # column -> row via iota-select + sublane reduce
        s_row = jnp.sum(jnp.where(eye, s_col, 0.0), axis=0, keepdims=True)  # (1, M)
        sa = s_row[:, 0:M2]
        sb = s_row[:, M2:]

        # fold the SE per-channel scale into the tiny linear-conv weights
        wa = (w_lina * sa).astype(jnp.bfloat16)             # (O2, M2)
        wb = (w_linb * sb).astype(jnp.bfloat16)

        # 1x1 linear conv (BN scale pre-folded) + bias + relu; channel concat folded
        z = (jnp.dot(wa, x2p_b.astype(jnp.bfloat16), preferred_element_type=jnp.float32)
             + jnp.dot(wb, x3_b.astype(jnp.bfloat16), preferred_element_type=jnp.float32))
        z = jnp.maximum(z + b_lin, 0.0)                      # (O2, HW)

        # concat [x1, z] + channel_shuffle(groups=2) folded into the output layout:
        # out[b, j, g*HW + hw] == shuffled channel (2*j + g); the wrapper's free
        # reshape (B, Cg, 2*HW) -> (B, 2*Cg, H, W) realizes the shuffle.
        x1_b = x_ref[b, 0:Cin2, :].astype(out_dtype)
        z = z.astype(out_dtype)
        if Cin2 == Cg and O2 == Cg:                          # common ESNet case
            g0, g1 = x1_b, z
        else:
            cat = jnp.concatenate([x1_b, z], axis=0)
            g0, g1 = cat[:Cg], cat[Cg:]
        out_ref[b, :, 0:HW] = g0
        out_ref[b, :, HW:] = g1


def inverted_residual(x_nchw, kernel_params, *, block_batch=None):
    """NCHW in / NCHW out, matching PyTorch InvertedResidual (stride=1, inference BN)."""
    (w_pw_k, w_dw_k, w_se1t, w_se2, w_lina, w_linb,
     bias_cols, b_se1_row, b_lin_col) = kernel_params
    B, C, H, W = x_nchw.shape
    HW = H * W
    Cin2 = C // 2
    M2 = w_pw_k.shape[0]
    O2 = w_lina.shape[0]
    Ct = Cin2 + O2
    assert C % 2 == 0 and Ct % 2 == 0
    Cg = Ct // 2
    # sublane alignment of the in-kernel channel split (misaligned sublane slices
    # force Mosaic relayout copies of the whole block)
    sub = 32 // x_nchw.dtype.itemsize
    assert Cin2 % sub == 0, "in_channels//2 must be sublane-tile aligned for the input dtype"
    assert M2 % 8 == 0, "mid_channels//2 must be a multiple of 8 (f32 sublane tile)"

    # images per grid step: amortize per-step overhead for small feature maps, keep
    # >= 2 grid steps for v7x megacore, only lane-concat when HW is 128-aligned.
    if block_batch is None:
        bt = 1
        if HW % 128 == 0:
            bt = max(1, min(B, 1024 // HW, max(B // 2, 1)))
            while B % bt:
                bt -= 1
    else:
        bt = block_batch
    assert B % bt == 0
    n = bt * HW

    x = x_nchw.reshape(B, C, HW)          # free view: NCHW == (B, C, H*W)

    # per-pixel depthwise-conv edge masks, precomputed on the host (avoids an
    # in-kernel vector remainder for non-power-of-two W); tiled per image.
    pos = np.arange(HW, dtype=np.int64)
    hh, ww = pos // W, pos % W
    bits = ((hh >= 1).astype(np.int32)
            | ((hh <= H - 2).astype(np.int32) << 1)
            | ((ww >= 1).astype(np.int32) << 2)
            | ((ww <= W - 2).astype(np.int32) << 3))
    dw_mask = jnp.asarray(np.tile(bits, bt)[None, :], dtype=jnp.int32)

    kernel = functools.partial(_inverted_residual_kernel,
                               height=H, width=W, block_batch=bt)

    def full_spec(arr):
        zeros = (0,) * arr.ndim
        return pl.BlockSpec(arr.shape, lambda i, _z=zeros: _z)

    # VMEM budget: double-buffered in/out blocks + f32 intermediates + bf16 operands.
    itm = x_nchw.dtype.itemsize
    est = 2 * itm * (bt * C * HW + bt * Cg * 2 * HW)
    est += 6 * 4 * M2 * n
    est += 2 * (Cin2 + 2 * M2) * n
    est += 2 << 20
    vmem_limit = int(min(56 << 20, max(32 << 20, 2 * est)))

    out = pl.pallas_call(
        kernel,
        out_shape=jax.ShapeDtypeStruct((B, Cg, 2 * HW), x_nchw.dtype),
        grid=(B // bt,),
        in_specs=[pl.BlockSpec((1, n), lambda i: (0, 0)),
                  pl.BlockSpec((bt, C, HW), lambda i: (i, 0, 0))]
                 + [full_spec(p) for p in kernel_params],
        out_specs=pl.BlockSpec((bt, Cg, 2 * HW), lambda i: (i, 0, 0)),
        compiler_params=pltpu.CompilerParams(
            dimension_semantics=("parallel",),
            vmem_limit_bytes=vmem_limit),
    )(dw_mask, x, *kernel_params)

    # Free reshape: (B, Cg, 2*HW) -> (B, 2*Cg, H, W) interleaves the two groups,
    # i.e. it IS channel_shuffle(groups=2) on [x1, conv_linear(...)].
    return out.reshape(B, Ct, H, W)


def make_params(key, in_channels, mid_channels, out_channels):
    """Model-space parameters (torch layout, BN folded to inference scale/shift)."""
    Cin2 = in_channels // 2
    M2 = mid_channels // 2
    M = mid_channels
    M4 = mid_channels // 4
    O2 = out_channels // 2
    keys = jax.random.split(key, 8)

    def kaiming(k, shape, fan_in):
        return jax.random.normal(k, shape, jnp.float32) * jnp.sqrt(2.0 / fan_in)

    def bn_fold(k, c, eps=1e-5):
        kg, kb, km, kv = jax.random.split(k, 4)
        gamma = 1.0 + 0.1 * jax.random.normal(kg, (c,), jnp.float32)
        beta = 0.1 * jax.random.normal(kb, (c,), jnp.float32)
        mean = 0.1 * jax.random.normal(km, (c,), jnp.float32)
        var = jnp.abs(1.0 + 0.1 * jax.random.normal(kv, (c,), jnp.float32))
        scale = gamma / jnp.sqrt(var + eps)
        shift = beta - mean * scale
        return scale, shift

    w_pw = kaiming(keys[0], (M2, Cin2), Cin2)        # torch (M2, Cin2, 1, 1)
    s_pw, b_pw = bn_fold(keys[1], M2)
    w_dw = kaiming(keys[2], (M2, 9), 9)              # torch (M2, 1, 3, 3), groups=M2
    s_dw, b_dw = bn_fold(keys[3], M2)
    w_se1 = jax.random.normal(keys[4], (M4, M), jnp.float32)   # torch init.normal_
    b_se1 = jnp.zeros((M4,), jnp.float32)
    w_se2 = jax.random.normal(keys[5], (M, M4), jnp.float32)
    b_se2 = jnp.zeros((M,), jnp.float32)
    w_lin = kaiming(keys[6], (O2, M), M)             # torch (O2, M, 1, 1)
    s_lin, b_lin = bn_fold(keys[7], O2)
    return (w_pw, s_pw, b_pw, w_dw, s_dw, b_dw,
            w_se1, b_se1, w_se2, b_se2, w_lin, s_lin, b_lin)


def pack_params(model):
    """Fold BN scales into weights, pre-split / transpose / cast for the kernel."""
    (w_pw, s_pw, b_pw, w_dw, s_dw, b_dw,
     w_se1, b_se1, w_se2, b_se2, w_lin, s_lin, b_lin) = model
    M2 = w_pw.shape[0]
    M4, M = w_se1.shape
    O2 = w_lin.shape[0]

    w_pw_k = (w_pw * s_pw[:, None]).astype(jnp.bfloat16)          # BN scale folded, bf16 MXU
    w_dw_k = (w_dw * s_dw[:, None]).astype(jnp.float32)           # BN scale folded
    w_se1t = jnp.transpose(w_se1).astype(jnp.float32)              # (M, M4)
    w_se2_k = w_se2.astype(jnp.float32)                            # (M, M4)
    w_lin_s = w_lin * s_lin[:, None]                               # BN scale folded
    w_lina = w_lin_s[:, :M2].astype(jnp.bfloat16)                  # x2p half
    w_linb = w_lin_s[:, M2:].astype(jnp.bfloat16)                  # x3 half
    bias_cols = jnp.stack([jnp.concatenate([b_pw, b_dw]), b_se2], axis=1).astype(jnp.float32)
    b_se1_row = b_se1.reshape(1, M4).astype(jnp.float32)
    b_lin_col = b_lin.reshape(O2, 1).astype(jnp.float32)
    return (w_pw_k, w_dw_k, w_se1t, w_se2_k, w_lina, w_linb,
            bias_cols, b_se1_row, b_lin_col)


def reference(x_nchw, model):
    """Pure-JAX f32 reference of the PyTorch forward (inference-mode BN)."""
    (w_pw, s_pw, b_pw, w_dw, s_dw, b_dw,
     w_se1, b_se1, w_se2, b_se2, w_lin, s_lin, b_lin) = model
    B, C, H, W = x_nchw.shape
    Cin2 = C // 2
    M2 = w_pw.shape[0]
    hp = jax.lax.Precision.HIGHEST
    x = x_nchw.astype(jnp.float32)
    x1, x2 = x[:, :Cin2], x[:, Cin2:]
    y = jnp.einsum('mc,bchw->bmhw', w_pw, x2, precision=hp)
    x2p = jnp.maximum(y * s_pw[None, :, None, None] + b_pw[None, :, None, None], 0.0)
    xp = jnp.pad(x2p, ((0, 0), (0, 0), (1, 1), (1, 1)))
    acc = jnp.zeros_like(x2p)
    for ky in range(3):
        for kx in range(3):
            acc = acc + xp[:, :, ky:ky + H, kx:kx + W] * w_dw[:, ky * 3 + kx][None, :, None, None]
    x3 = acc * s_dw[None, :, None, None] + b_dw[None, :, None, None]
    cat = jnp.concatenate([x2p, x3], axis=1)                       # (B, M, H, W)
    pool = jnp.mean(cat, axis=(2, 3))                              # (B, M)
    h = jnp.maximum(pool @ w_se1.T + b_se1[None, :], 0.0)          # (B, M4)
    s = jnp.clip((h @ w_se2.T + b_se2[None, :]) / 6.0 + 0.5, 0.0, 1.0)   # hardsigmoid
    se = cat * s[:, :, None, None]
    z = jnp.einsum('om,bmhw->bohw', w_lin, se, precision=hp)
    z = jnp.maximum(z * s_lin[None, :, None, None] + b_lin[None, :, None, None], 0.0)
    out = jnp.concatenate([x1, z], axis=1)
    Ct = out.shape[1]
    out = out.reshape(B, 2, Ct // 2, H, W)
    out = jnp.transpose(out, (0, 2, 1, 3, 4)).reshape(B, Ct, H, W)
    return out


if __name__ == "__main__":
    key = jax.random.PRNGKey(0)
    kx, kp = jax.random.split(key)
    B, C, H, W = 4, 16, 16, 16          # NCHW input, like the PyTorch module
    mid_channels, out_channels = 16, 16
    # stride is fixed at 1: the module's cat([x2, x3]) requires stride == 1.

    x = jax.random.normal(kx, (B, C, H, W), jnp.float32)
    model = make_params(kp, C, mid_channels, out_channels)
    kparams = pack_params(model)

    y_ref = reference(x, model)

    # default path: 2 images per grid step (small feature map), grid = 2 parallel steps
    y = jax.jit(inverted_residual)(x, kparams)
    jax.block_until_ready(y)
    assert y.shape == (B, C // 2 + out_channels // 2, H, W), y.shape
    # bf16 MXU operands -> compare against the f32 reference at a bf16-appropriate tolerance
    np.testing.assert_allclose(np.asarray(y), np.asarray(y_ref), rtol=3e-2, atol=3e-2)

    # large-feature-map configuration: one image per grid step
    y1 = jax.jit(functools.partial(inverted_residual, block_batch=1))(x, kparams)
    jax.block_until_ready(y1)
    np.testing.assert_allclose(np.asarray(y1), np.asarray(y_ref), rtol=3e-2, atol=3e-2)

    print("KERNEL_OK")
</pallas_src>

<mosaic_0001>
module attributes {stable_mosaic.version = 11 : i64} {
  func.func @_inverted_residual_kernel(%arg0: i32, %arg1: memref<1x512xi32, #tpu.memory_space<vmem>>, %arg2: memref<2x16x256xf32, #tpu.memory_space<vmem>>, %arg3: memref<8x8xbf16, #tpu.memory_space<vmem>>, %arg4: memref<8x9xf32, #tpu.memory_space<vmem>>, %arg5: memref<16x4xf32, #tpu.memory_space<vmem>>, %arg6: memref<16x4xf32, #tpu.memory_space<vmem>>, %arg7: memref<8x8xbf16, #tpu.memory_space<vmem>>, %arg8: memref<8x8xbf16, #tpu.memory_space<vmem>>, %arg9: memref<16x2xf32, #tpu.memory_space<vmem>>, %arg10: memref<1x4xf32, #tpu.memory_space<vmem>>, %arg11: memref<8x1xf32, #tpu.memory_space<vmem>>, %arg12: memref<2x8x512xf32, #tpu.memory_space<vmem>>) attributes {dimension_semantics = [#tpu.dimension_semantics<parallel>], iteration_bounds = array<i64: 2>, scalar_prefetch = 0 : i64, scratch_operands = 0 : i64, tpu.core_type = #tpu.core_type<tc>, window_params = [{pipeline_mode = #tpu.pipeline_mode<synchronous>, transform_indices = @transform_0, window_bounds = array<i64: 1, 512>}, {transform_indices = @transform_1, window_bounds = array<i64: 2, 16, 256>}, {pipeline_mode = #tpu.pipeline_mode<synchronous>, transform_indices = @transform_2, window_bounds = array<i64: 8, 8>}, {pipeline_mode = #tpu.pipeline_mode<synchronous>, transform_indices = @transform_3, window_bounds = array<i64: 8, 9>}, {pipeline_mode = #tpu.pipeline_mode<synchronous>, transform_indices = @transform_4, window_bounds = array<i64: 16, 4>}, {pipeline_mode = #tpu.pipeline_mode<synchronous>, transform_indices = @transform_5, window_bounds = array<i64: 16, 4>}, {pipeline_mode = #tpu.pipeline_mode<synchronous>, transform_indices = @transform_6, window_bounds = array<i64: 8, 8>}, {pipeline_mode = #tpu.pipeline_mode<synchronous>, transform_indices = @transform_7, window_bounds = array<i64: 8, 8>}, {pipeline_mode = #tpu.pipeline_mode<synchronous>, transform_indices = @transform_8, window_bounds = array<i64: 16, 2>}, {pipeline_mode = #tpu.pipeline_mode<synchronous>, transform_indices = @transform_9, window_bounds = array<i64: 1, 4>}, {pipeline_mode = #tpu.pipeline_mode<synchronous>, transform_indices = @transform_10, window_bounds = array<i64: 8, 1>}, {transform_indices = @transform_11, window_bounds = array<i64: 2, 8, 512>}]} {
    %c0 = arith.constant 0 : index
    %c0_0 = arith.constant 0 : index
    %0 = vector.load %arg9[%c0, %c0_0] : memref<16x2xf32, #tpu.memory_space<vmem>>, vector<8x1xf32>
    %c8 = arith.constant 8 : index
    %c0_1 = arith.constant 0 : index
    %1 = vector.load %arg9[%c8, %c0_1] : memref<16x2xf32, #tpu.memory_space<vmem>>, vector<8x1xf32>
    %c0_2 = arith.constant 0 : index
    %c1 = arith.constant 1 : index
    %2 = vector.load %arg9[%c0_2, %c1] : memref<16x2xf32, #tpu.memory_space<vmem>>, vector<16x1xf32>
    %c0_3 = arith.constant 0 : index
    %c0_4 = arith.constant 0 : index
    %3 = vector.load %arg10[%c0_3, %c0_4] : memref<1x4xf32, #tpu.memory_space<vmem>>, vector<1x4xf32>
    %c0_5 = arith.constant 0 : index
    %c0_6 = arith.constant 0 : index
    %4 = vector.load %arg11[%c0_5, %c0_6] : memref<8x1xf32, #tpu.memory_space<vmem>>, vector<8x1xf32>
    %c0_7 = arith.constant 0 : index
    %c8_8 = arith.constant 8 : index
    %c0_9 = arith.constant 0 : index
    %5 = vector.load %arg2[%c0_7, %c8_8, %c0_9] : memref<2x16x256xf32, #tpu.memory_space<vmem>>, vector<1x8x256xf32>
    %6 = vector.shape_cast %5 : vector<1x8x256xf32> to vector<8x256xf32>
    %c1_10 = arith.constant 1 : index
    %c8_11 = arith.constant 8 : index
    %c0_12 = arith.constant 0 : index
    %7 = vector.load %arg2[%c1_10, %c8_11, %c0_12] : memref<2x16x256xf32, #tpu.memory_space<vmem>>, vector<1x8x256xf32>
    %8 = vector.shape_cast %7 : vector<1x8x256xf32> to vector<8x256xf32>
    %9 = tpu.concatenate %6, %8 in 1 : vector<8x256xf32>, vector<8x256xf32> -> vector<8x512xf32>
    %10 = arith.truncf %9 : vector<8x512xf32> to vector<8x512xbf16>
    %c0_13 = arith.constant 0 : index
    %c0_14 = arith.constant 0 : index
    %11 = vector.load %arg3[%c0_13, %c0_14] : memref<8x8xbf16, #tpu.memory_space<vmem>>, vector<8x8xbf16>
    %cst = arith.constant dense<0.000000e+00> : vector<8x512xf32>
    %12 = tpu.matmul %11, %10, %cst {dimension_numbers = #tpu.dot_dimension_numbers<[1], [0], [0], [1], [0, 0, 1, 1], [], []>} : vector<8x8xbf16>, vector<8x512xbf16>, vector<8x512xf32> -> vector<8x512xf32>
    %13 = vector.broadcast %0 : vector<8x1xf32> to vector<8x512xf32>
    %14 = arith.addf %12, %13 : vector<8x512xf32>
    %cst_15 = arith.constant 0.000000e+00 : f32
    %15 = vector.broadcast %cst_15 : f32 to vector<8x512xf32>
    %16 = arith.maximumf %14, %15 : vector<8x512xf32>
    %c0_16 = arith.constant 0 : index
    %c0_17 = arith.constant 0 : index
    %17 = vector.load %arg1[%c0_16, %c0_17] : memref<1x512xi32, #tpu.memory_space<vmem>>, vector<1x512xi32>
    %c1_i32 = arith.constant 1 : i32
    %18 = vector.broadcast %c1_i32 : i32 to vector<1x512xi32>
    %19 = arith.andi %17, %18 : vector<1x512xi32>
    %c0_i32 = arith.constant 0 : i32
    %20 = vector.broadcast %c0_i32 : i32 to vector<1x512xi32>
    %21 = arith.cmpi ne, %19, %20 : vector<1x512xi32>
    %c2_i32 = arith.constant 2 : i32
    %22 = vector.broadcast %c2_i32 : i32 to vector<1x512xi32>
    %23 = arith.andi %17, %22 : vector<1x512xi32>
    %c0_i32_18 = arith.constant 0 : i32
    %24 = vector.broadcast %c0_i32_18 : i32 to vector<1x512xi32>
    %25 = arith.cmpi ne, %23, %24 : vector<1x512xi32>
    %c4_i32 = arith.constant 4 : i32
    %26 = vector.broadcast %c4_i32 : i32 to vector<1x512xi32>
    %27 = arith.andi %17, %26 : vector<1x512xi32>
    %c0_i32_19 = arith.constant 0 : i32
    %28 = vector.broadcast %c0_i32_19 : i32 to vector<1x512xi32>
    %29 = arith.cmpi ne, %27, %28 : vector<1x512xi32>
    %c8_i32 = arith.constant 8 : i32
    %30 = vector.broadcast %c8_i32 : i32 to vector<1x512xi32>
    %31 = arith.andi %17, %30 : vector<1x512xi32>
    %c0_i32_20 = arith.constant 0 : i32
    %32 = vector.broadcast %c0_i32_20 : i32 to vector<1x512xi32>
    %33 = arith.cmpi ne, %31, %32 : vector<1x512xi32>
    %c0_21 = arith.constant 0 : index
    %c0_22 = arith.constant 0 : index
    %34 = vector.load %arg4[%c0_21, %c0_22] : memref<8x9xf32, #tpu.memory_space<vmem>>, vector<8x9xf32>
    %cst_23 = arith.constant 0.000000e+00 : f32
    %35 = vector.broadcast %cst_23 : f32 to vector<8x512xf32>
    %c17_i32 = arith.constant 17 : i32
    %36 = tpu.dynamic_rotate %16 by %c17_i32 dim 1 : vector<8x512xf32>, i32 -> vector<8x512xf32>
    %37 = arith.andi %21, %29 : vector<1x512xi1>
    %cst_24 = arith.constant 0.000000e+00 : f32
    %38 = vector.shape_cast %37 : vector<1x512xi1> to vector<1x512xi1>
    %39 = vector.broadcast %38 : vector<1x512xi1> to vector<8x512xi1>
    %40 = vector.broadcast %cst_24 : f32 to vector<8x512xf32>
    %41 = arith.select %39, %36, %40 : vector<8x512xi1>, vector<8x512xf32>
    %42 = vector.extract_strided_slice %34 {offsets = [0, 0], sizes = [8, 1], strides = [1, 1]} : vector<8x9xf32> to vector<8x1xf32>
    %43 = vector.broadcast %42 : vector<8x1xf32> to vector<8x512xf32>
    %44 = arith.mulf %43, %41 : vector<8x512xf32>
    %45 = arith.addf %35, %44 : vector<8x512xf32>
    %c16_i32 = arith.constant 16 : i32
    %46 = tpu.dynamic_rotate %16 by %c16_i32 dim 1 : vector<8x512xf32>, i32 -> vector<8x512xf32>
    %cst_25 = arith.constant 0.000000e+00 : f32
    %47 = vector.shape_cast %21 : vector<1x512xi1> to vector<1x512xi1>
    %48 = vector.broadcast %47 : vector<1x512xi1> to vector<8x512xi1>
    %49 = vector.broadcast %cst_25 : f32 to vector<8x512xf32>
    %50 = arith.select %48, %46, %49 : vector<8x512xi1>, vector<8x512xf32>
    %51 = vector.extract_strided_slice %34 {offsets = [0, 1], sizes = [8, 1], strides = [1, 1]} : vector<8x9xf32> to vector<8x1xf32>
    %52 = vector.broadcast %51 : vector<8x1xf32> to vector<8x512xf32>
    %53 = arith.mulf %52, %50 : vector<8x512xf32>
    %54 = arith.addf %45, %53 : vector<8x512xf32>
    %c15_i32 = arith.constant 15 : i32
    %55 = tpu.dynamic_rotate %16 by %c15_i32 dim 1 : vector<8x512xf32>, i32 -> vector<8x512xf32>
    %56 = arith.andi %21, %33 : vector<1x512xi1>
    %cst_26 = arith.constant 0.000000e+00 : f32
    %57 = vector.shape_cast %56 : vector<1x512xi1> to vector<1x512xi1>
    %58 = vector.broadcast %57 : vector<1x512xi1> to vector<8x512xi1>
    %59 = vector.broadcast %cst_26 : f32 to vector<8x512xf32>
    %60 = arith.select %58, %55, %59 : vector<8x512xi1>, vector<8x512xf32>
    %61 = vector.extract_strided_slice %34 {offsets = [0, 2], sizes = [8, 1], strides = [1, 1]} : vector<8x9xf32> to vector<8x1xf32>
    %62 = vector.broadcast %61 : vector<8x1xf32> to vector<8x512xf32>
    %63 = arith.mulf %62, %60 : vector<8x512xf32>
    %64 = arith.addf %54, %63 : vector<8x512xf32>
    %c1_i32_27 = arith.constant 1 : i32
    %65 = tpu.dynamic_rotate %16 by %c1_i32_27 dim 1 : vector<8x512xf32>, i32 -> vector<8x512xf32>
    %cst_28 = arith.constant 0.000000e+00 : f32
    %66 = vector.shape_cast %29 : vector<1x512xi1> to vector<1x512xi1>
    %67 = vector.broadcast %66 : vector<1x512xi1> to vector<8x512xi1>
    %68 = vector.broadcast %cst_28 : f32 to vector<8x512xf32>
    %69 = arith.select %67, %65, %68 : vector<8x512xi1>, vector<8x512xf32>
    %70 = vector.extract_strided_slice %34 {offsets = [0, 3], sizes = [8, 1], strides = [1, 1]} : vector<8x9xf32> to vector<8x1xf32>
    %71 = vector.broadcast %70 : vector<8x1xf32> to vector<8x512xf32>
    %72 = arith.mulf %71, %69 : vector<8x512xf32>
    %73 = arith.addf %64, %72 : vector<8x512xf32>
    %74 = vector.extract_strided_slice %34 {offsets = [0, 4], sizes = [8, 1], strides = [1, 1]} : vector<8x9xf32> to vector<8x1xf32>
    %75 = vector.broadcast %74 : vector<8x1xf32> to vector<8x512xf32>
    %76 = arith.mulf %75, %16 : vector<8x512xf32>
    %77 = arith.addf %73, %76 : vector<8x512xf32>
    %c511_i32 = arith.constant 511 : i32
    %78 = tpu.dynamic_rotate %16 by %c511_i32 dim 1 : vector<8x512xf32>, i32 -> vector<8x512xf32>
    %cst_29 = arith.constant 0.000000e+00 : f32
    %79 = vector.shape_cast %33 : vector<1x512xi1> to vector<1x512xi1>
    %80 = vector.broadcast %79 : vector<1x512xi1> to vector<8x512xi1>
    %81 = vector.broadcast %cst_29 : f32 to vector<8x512xf32>
    %82 = arith.select %80, %78, %81 : vector<8x512xi1>, vector<8x512xf32>
    %83 = vector.extract_strided_slice %34 {offsets = [0, 5], sizes = [8, 1], strides = [1, 1]} : vector<8x9xf32> to vector<8x1xf32>
    %84 = vector.broadcast %83 : vector<8x1xf32> to vector<8x512xf32>
    %85 = arith.mulf %84, %82 : vector<8x512xf32>
    %86 = arith.addf %77, %85 : vector<8x512xf32>
    %c497_i32 = arith.constant 497 : i32
    %87 = tpu.dynamic_rotate %16 by %c497_i32 dim 1 : vector<8x512xf32>, i32 -> vector<8x512xf32>
    %88 = arith.andi %25, %29 : vector<1x512xi1>
    %cst_30 = arith.constant 0.000000e+00 : f32
    %89 = vector.shape_cast %88 : vector<1x512xi1> to vector<1x512xi1>
    %90 = vector.broadcast %89 : vector<1x512xi1> to vector<8x512xi1>
    %91 = vector.broadcast %cst_30 : f32 to vector<8x512xf32>
    %92 = arith.select %90, %87, %91 : vector<8x512xi1>, vector<8x512xf32>
    %93 = vector.extract_strided_slice %34 {offsets = [0, 6], sizes = [8, 1], strides = [1, 1]} : vector<8x9xf32> to vector<8x1xf32>
    %94 = vector.broadcast %93 : vector<8x1xf32> to vector<8x512xf32>
    %95 = arith.mulf %94, %92 : vector<8x512xf32>
    %96 = arith.addf %86, %95 : vector<8x512xf32>
    %c496_i32 = arith.constant 496 : i32
    %97 = tpu.dynamic_rotate %16 by %c496_i32 dim 1 : vector<8x512xf32>, i32 -> vector<8x512xf32>
    %cst_31 = arith.constant 0.000000e+00 : f32
    %98 = vector.shape_cast %25 : vector<1x512xi1> to vector<1x512xi1>
    %99 = vector.broadcast %98 : vector<1x512xi1> to vector<8x512xi1>
    %100 = vector.broadcast %cst_31 : f32 to vector<8x512xf32>
    %101 = arith.select %99, %97, %100 : vector<8x512xi1>, vector<8x512xf32>
    %102 = vector.extract_strided_slice %34 {offsets = [0, 7], sizes = [8, 1], strides = [1, 1]} : vector<8x9xf32> to vector<8x1xf32>
    %103 = vector.broadcast %102 : vector<8x1xf32> to vector<8x512xf32>
    %104 = arith.mulf %103, %101 : vector<8x512xf32>
    %105 = arith.addf %96, %104 : vector<8x512xf32>
    %c495_i32 = arith.constant 495 : i32
    %106 = tpu.dynamic_rotate %16 by %c495_i32 dim 1 : vector<8x512xf32>, i32 -> vector<8x512xf32>
    %107 = arith.andi %25, %33 : vector<1x512xi1>
    %cst_32 = arith.constant 0.000000e+00 : f32
    %108 = vector.shape_cast %107 : vector<1x512xi1> to vector<1x512xi1>
    %109 = vector.broadcast %108 : vector<1x512xi1> to vector<8x512xi1>
    %110 = vector.broadcast %cst_32 : f32 to vector<8x512xf32>
    %111 = arith.select %109, %106, %110 : vector<8x512xi1>, vector<8x512xf32>
    %112 = vector.extract_strided_slice %34 {offsets = [0, 8], sizes = [8, 1], strides = [1, 1]} : vector<8x9xf32> to vector<8x1xf32>
    %113 = vector.broadcast %112 : vector<8x1xf32> to vector<8x512xf32>
    %114 = arith.mulf %113, %111 : vector<8x512xf32>
    %115 = arith.addf %105, %114 : vector<8x512xf32>
    %116 = vector.broadcast %1 : vector<8x1xf32> to vector<8x512xf32>
    %117 = arith.addf %115, %116 : vector<8x512xf32>
    %c0_33 = arith.constant 0 : index
    %c0_34 = arith.constant 0 : index
    %118 = vector.load %arg5[%c0_33, %c0_34] : memref<16x4xf32, #tpu.memory_space<vmem>>, vector<16x4xf32>
    %c0_35 = arith.constant 0 : index
    %c0_36 = arith.constant 0 : index
    %119 = vector.load %arg6[%c0_35, %c0_36] : memref<16x4xf32, #tpu.memory_space<vmem>>, vector<16x4xf32>
    %c0_37 = arith.constant 0 : index
    %c0_38 = arith.constant 0 : index
    %120 = vector.load %arg7[%c0_37, %c0_38] : memref<8x8xbf16, #tpu.memory_space<vmem>>, vector<8x8xbf16>
    %121 = arith.extf %120 : vector<8x8xbf16> to vector<8x8xf32>
    %c0_39 = arith.constant 0 : index
    %c0_40 = arith.constant 0 : index
    %122 = vector.load %arg8[%c0_39, %c0_40] : memref<8x8xbf16, #tpu.memory_space<vmem>>, vector<8x8xbf16>
    %123 = arith.extf %122 : vector<8x8xbf16> to vector<8x8xf32>
    %124 = tpu.iota {dimensions = array<i32: 0>} : vector<16x16xi32>
    %125 = tpu.iota {dimensions = array<i32: 1>} : vector<16x16xi32>
    %126 = arith.cmpi eq, %124, %125 : vector<16x16xi32>
    %127 = vector.extract_strided_slice %16 {offsets = [0, 0], sizes = [8, 256], strides = [1, 1]} : vector<8x512xf32> to vector<8x256xf32>
    %128 = vector.extract_strided_slice %117 {offsets = [0, 0], sizes = [8, 256], strides = [1, 1]} : vector<8x512xf32> to vector<8x256xf32>
    %cst_41 = arith.constant dense<0.000000e+00> : vector<8xf32>
    %129 = vector.multi_reduction <add>, %127, %cst_41 [1] : vector<8x256xf32> to vector<8xf32>
    %130 = vector.shape_cast %129 : vector<8xf32> to vector<8x1xf32>
    %cst_42 = arith.constant 3.906250e-03 : f32
    %131 = vector.broadcast %cst_42 : f32 to vector<8x1xf32>
    %132 = arith.mulf %130, %131 : vector<8x1xf32>
    %cst_43 = arith.constant dense<0.000000e+00> : vector<8xf32>
    %133 = vector.multi_reduction <add>, %128, %cst_43 [1] : vector<8x256xf32> to vector<8xf32>
    %134 = vector.shape_cast %133 : vector<8xf32> to vector<8x1xf32>
    %cst_44 = arith.constant 3.906250e-03 : f32
    %135 = vector.broadcast %cst_44 : f32 to vector<8x1xf32>
    %136 = arith.mulf %134, %135 : vector<8x1xf32>
    %137 = tpu.concatenate %132, %136 in 0 : vector<8x1xf32>, vector<8x1xf32> -> vector<16x1xf32>
    %138 = vector.broadcast %137 : vector<16x1xf32> to vector<16x4xf32>
    %139 = arith.mulf %118, %138 : vector<16x4xf32>
    %cst_45 = arith.constant dense<0.000000e+00> : vector<4xf32>
    %140 = vector.multi_reduction <add>, %139, %cst_45 [0] : vector<16x4xf32> to vector<4xf32>
    %141 = vector.shape_cast %140 : vector<4xf32> to vector<1x4xf32>
    %142 = arith.addf %141, %3 : vector<1x4xf32>
    %cst_46 = arith.constant 0.000000e+00 : f32
    %143 = vector.broadcast %cst_46 : f32 to vector<1x4xf32>
    %144 = arith.maximumf %142, %143 : vector<1x4xf32>
    %145 = vector.broadcast %144 : vector<1x4xf32> to vector<16x4xf32>
    %146 = arith.mulf %119, %145 : vector<16x4xf32>
    %cst_47 = arith.constant dense<0.000000e+00> : vector<16xf32>
    %147 = vector.multi_reduction <add>, %146, %cst_47 [1] : vector<16x4xf32> to vector<16xf32>
    %148 = vector.shape_cast %147 : vector<16xf32> to vector<16x1xf32>
    %149 = arith.addf %148, %2 : vector<16x1xf32>
    %cst_48 = arith.constant 0.166666672 : f32
    %150 = vector.broadcast %cst_48 : f32 to vector<16x1xf32>
    %151 = arith.mulf %149, %150 : vector<16x1xf32>
    %cst_49 = arith.constant 5.000000e-01 : f32
    %152 = vector.broadcast %cst_49 : f32 to vector<16x1xf32>
    %153 = arith.addf %151, %152 : vector<16x1xf32>
    %cst_50 = arith.constant 0.000000e+00 : f32
    %cst_51 = arith.constant 1.000000e+00 : f32
    %154 = vector.broadcast %cst_50 : f32 to vector<16x1xf32>
    %155 = arith.maximumf %154, %153 : vector<16x1xf32>
    %156 = vector.broadcast %cst_51 : f32 to vector<16x1xf32>
    %157 = arith.minimumf %156, %155 : vector<16x1xf32>
    %cst_52 = arith.constant 0.000000e+00 : f32
    %158 = vector.shape_cast %157 : vector<16x1xf32> to vector<16x1xf32>
    %159 = vector.broadcast %158 : vector<16x1xf32> to vector<16x16xf32>
    %160 = vector.broadcast %cst_52 : f32 to vector<16x16xf32>
    %161 = arith.select %126, %159, %160 : vector<16x16xi1>, vector<16x16xf32>
    %cst_53 = arith.constant dense<0.000000e+00> : vector<16xf32>
    %162 = vector.multi_reduction <add>, %161, %cst_53 [0] : vector<16x16xf32> to vector<16xf32>
    %163 = vector.shape_cast %162 : vector<16xf32> to vector<1x16xf32>
    %164 = vector.extract_strided_slice %163 {offsets = [0, 0], sizes = [1, 8], strides = [1, 1]} : vector<1x16xf32> to vector<1x8xf32>
    %165 = vector.extract_strided_slice %163 {offsets = [0, 8], sizes = [1, 8], strides = [1, 1]} : vector<1x16xf32> to vector<1x8xf32>
    %166 = vector.broadcast %164 : vector<1x8xf32> to vector<8x8xf32>
    %167 = arith.mulf %121, %166 : vector<8x8xf32>
    %168 = arith.truncf %167 : vector<8x8xf32> to vector<8x8xbf16>
    %169 = vector.broadcast %165 : vector<1x8xf32> to vector<8x8xf32>
    %170 = arith.mulf %123, %169 : vector<8x8xf32>
    %171 = arith.truncf %170 : vector<8x8xf32> to vector<8x8xbf16>
    %172 = arith.truncf %127 : vector<8x256xf32> to vector<8x256xbf16>
    %cst_54 = arith.constant dense<0.000000e+00> : vector<8x256xf32>
    %173 = tpu.matmul %168, %172, %cst_54 {dimension_numbers = #tpu.dot_dimension_numbers<[1], [0], [0], [1], [0, 0, 1, 1], [], []>} : vector<8x8xbf16>, vector<8x256xbf16>, vector<8x256xf32> -> vector<8x256xf32>
    %174 = arith.truncf %128 : vector<8x256xf32> to vector<8x256xbf16>
    %cst_55 = arith.constant dense<0.000000e+00> : vector<8x256xf32>
    %175 = tpu.matmul %171, %174, %cst_55 {dimension_numbers = #tpu.dot_dimension_numbers<[1], [0], [0], [1], [0, 0, 1, 1], [], []>} : vector<8x8xbf16>, vector<8x256xbf16>, vector<8x256xf32> -> vector<8x256xf32>
    %176 = arith.addf %173, %175 : vector<8x256xf32>
    %177 = vector.broadcast %4 : vector<8x1xf32> to vector<8x256xf32>
    %178 = arith.addf %176, %177 : vector<8x256xf32>
    %cst_56 = arith.constant 0.000000e+00 : f32
    %179 = vector.broadcast %cst_56 : f32 to vector<8x256xf32>
    %180 = arith.maximumf %178, %179 : vector<8x256xf32>
    %c0_57 = arith.constant 0 : index
    %c0_58 = arith.constant 0 : index
    %c0_59 = arith.constant 0 : index
    %181 = vector.load %arg2[%c0_57, %c0_58, %c0_59] : memref<2x16x256xf32, #tpu.memory_space<vmem>>, vector<1x8x256xf32>
    %182 = vector.shape_cast %181 : vector<1x8x256xf32> to vector<8x256xf32>
    %c0_60 = arith.constant 0 : index
    %c0_61 = arith.constant 0 : index
    %c0_62 = arith.constant 0 : index
    %183 = vector.load %arg12[%c0_60, %c0_61, %c0_62] : memref<2x8x512xf32, #tpu.memory_space<vmem>>, vector<1x8x256xf32>
    %184 = vector.shape_cast %183 : vector<1x8x256xf32> to vector<8x256xf32>
    %185 = vector.shape_cast %182 : vector<8x256xf32> to vector<1x8x256xf32>
    tpu.vector_store %arg12[%c0_60, %c0_61, %c0_62], %185 {strides = array<i32>} : memref<2x8x512xf32, #tpu.memory_space<vmem>>, vector<1x8x256xf32>,
    %c0_63 = arith.constant 0 : index
    %c0_64 = arith.constant 0 : index
    %c256 = arith.constant 256 : index
    %186 = vector.load %arg12[%c0_63, %c0_64, %c256] : memref<2x8x512xf32, #tpu.memory_space<vmem>>, vector<1x8x256xf32>
    %187 = vector.shape_cast %186 : vector<1x8x256xf32> to vector<8x256xf32>
    %188 = vector.shape_cast %180 : vector<8x256xf32> to vector<1x8x256xf32>
    tpu.vector_store %arg12[%c0_63, %c0_64, %c256], %188 {strides = array<i32>} : memref<2x8x512xf32, #tpu.memory_space<vmem>>, vector<1x8x256xf32>,
    %189 = vector.extract_strided_slice %16 {offsets = [0, 256], sizes = [8, 256], strides = [1, 1]} : vector<8x512xf32> to vector<8x256xf32>
    %190 = vector.extract_strided_slice %117 {offsets = [0, 256], sizes = [8, 256], strides = [1, 1]} : vector<8x512xf32> to vector<8x256xf32>
    %cst_65 = arith.constant dense<0.000000e+00> : vector<8xf32>
    %191 = vector.multi_reduction <add>, %189, %cst_65 [1] : vector<8x256xf32> to vector<8xf32>
    %192 = vector.shape_cast %191 : vector<8xf32> to vector<8x1xf32>
    %cst_66 = arith.constant 3.906250e-03 : f32
    %193 = vector.broadcast %cst_66 : f32 to vector<8x1xf32>
    %194 = arith.mulf %192, %193 : vector<8x1xf32>
    %cst_67 = arith.constant dense<0.000000e+00> : vector<8xf32>
    %195 = vector.multi_reduction <add>, %190, %cst_67 [1] : vector<8x256xf32> to vector<8xf32>
    %196 = vector.shape_cast %195 : vector<8xf32> to vector<8x1xf32>
    %cst_68 = arith.constant 3.906250e-03 : f32
    %197 = vector.broadcast %cst_68 : f32 to vector<8x1xf32>
    %198 = arith.mulf %196, %197 : vector<8x1xf32>
    %199 = tpu.concatenate %194, %198 in 0 : vector<8x1xf32>, vector<8x1xf32> -> vector<16x1xf32>
    %200 = vector.broadcast %199 : vector<16x1xf32> to vector<16x4xf32>
    %201 = arith.mulf %118, %200 : vector<16x4xf32>
    %cst_69 = arith.constant dense<0.000000e+00> : vector<4xf32>
    %202 = vector.multi_reduction <add>, %201, %cst_69 [0] : vector<16x4xf32> to vector<4xf32>
    %203 = vector.shape_cast %202 : vector<4xf32> to vector<1x4xf32>
    %204 = arith.addf %203, %3 : vector<1x4xf32>
    %cst_70 = arith.constant 0.000000e+00 : f32
    %205 = vector.broadcast %cst_70 : f32 to vector<1x4xf32>
    %206 = arith.maximumf %204, %205 : vector<1x4xf32>
    %207 = vector.broadcast %206 : vector<1x4xf32> to vector<16x4xf32>
    %208 = arith.mulf %119, %207 : vector<16x4xf32>
    %cst_71 = arith.constant dense<0.000000e+00> : vector<16xf32>
    %209 = vector.multi_reduction <add>, %208, %cst_71 [1] : vector<16x4xf32> to vector<16xf32>
    %210 = vector.shape_cast %209 : vector<16xf32> to vector<16x1xf32>
    %211 = arith.addf %210, %2 : vector<16x1xf32>
    %cst_72 = arith.constant 0.166666672 : f32
    %212 = vector.broadcast %cst_72 : f32 to vector<16x1xf32>
    %213 = arith.mulf %211, %212 : vector<16x1xf32>
    %cst_73 = arith.constant 5.000000e-01 : f32
    %214 = vector.broadcast %cst_73 : f32 to vector<16x1xf32>
    %215 = arith.addf %213, %214 : vector<16x1xf32>
    %cst_74 = arith.constant 0.000000e+00 : f32
    %cst_75 = arith.constant 1.000000e+00 : f32
    %216 = vector.broadcast %cst_74 : f32 to vector<16x1xf32>
    %217 = arith.maximumf %216, %215 : vector<16x1xf32>
    %218 = vector.broadcast %cst_75 : f32 to vector<16x1xf32>
    %219 = arith.minimumf %218, %217 : vector<16x1xf32>
    %cst_76 = arith.constant 0.000000e+00 : f32
    %220 = vector.shape_cast %219 : vector<16x1xf32> to vector<16x1xf32>
    %221 = vector.broadcast %220 : vector<16x1xf32> to vector<16x16xf32>
    %222 = vector.broadcast %cst_76 : f32 to vector<16x16xf32>
    %223 = arith.select %126, %221, %222 : vector<16x16xi1>, vector<16x16xf32>
    %cst_77 = arith.constant dense<0.000000e+00> : vector<16xf32>
    %224 = vector.multi_reduction <add>, %223, %cst_77 [0] : vector<16x16xf32> to vector<16xf32>
    %225 = vector.shape_cast %224 : vector<16xf32> to vector<1x16xf32>
    %226 = vector.extract_strided_slice %225 {offsets = [0, 0], sizes = [1, 8], strides = [1, 1]} : vector<1x16xf32> to vector<1x8xf32>
    %227 = vector.extract_strided_slice %225 {offsets = [0, 8], sizes = [1, 8], strides = [1, 1]} : vector<1x16xf32> to vector<1x8xf32>
    %228 = vector.broadcast %226 : vector<1x8xf32> to vector<8x8xf32>
    %229 = arith.mulf %121, %228 : vector<8x8xf32>
    %230 = arith.truncf %229 : vector<8x8xf32> to vector<8x8xbf16>
    %231 = vector.broadcast %227 : vector<1x8xf32> to vector<8x8xf32>
    %232 = arith.mulf %123, %231 : vector<8x8xf32>
    %233 = arith.truncf %232 : vector<8x8xf32> to vector<8x8xbf16>
    %234 = arith.truncf %189 : vector<8x256xf32> to vector<8x256xbf16>
    %cst_78 = arith.constant dense<0.000000e+00> : vector<8x256xf32>
    %235 = tpu.matmul %230, %234, %cst_78 {dimension_numbers = #tpu.dot_dimension_numbers<[1], [0], [0], [1], [0, 0, 1, 1], [], []>} : vector<8x8xbf16>, vector<8x256xbf16>, vector<8x256xf32> -> vector<8x256xf32>
    %236 = arith.truncf %190 : vector<8x256xf32> to vector<8x256xbf16>
    %cst_79 = arith.constant dense<0.000000e+00> : vector<8x256xf32>
    %237 = tpu.matmul %233, %236, %cst_79 {dimension_numbers = #tpu.dot_dimension_numbers<[1], [0], [0], [1], [0, 0, 1, 1], [], []>} : vector<8x8xbf16>, vector<8x256xbf16>, vector<8x256xf32> -> vector<8x256xf32>
    %238 = arith.addf %235, %237 : vector<8x256xf32>
    %239 = vector.broadcast %4 : vector<8x1xf32> to vector<8x256xf32>
    %240 = arith.addf %238, %239 : vector<8x256xf32>
    %cst_80 = arith.constant 0.000000e+00 : f32
    %241 = vector.broadcast %cst_80 : f32 to vector<8x256xf32>
    %242 = arith.maximumf %240, %241 : vector<8x256xf32>
    %c1_81 = arith.constant 1 : index
    %c0_82 = arith.constant 0 : index
    %c0_83 = arith.constant 0 : index
    %243 = vector.load %arg2[%c1_81, %c0_82, %c0_83] : memref<2x16x256xf32, #tpu.memory_space<vmem>>, vector<1x8x256xf32>
    %244 = vector.shape_cast %243 : vector<1x8x256xf32> to vector<8x256xf32>
    %c1_84 = arith.constant 1 : index
    %c0_85 = arith.constant 0 : index
    %c0_86 = arith.constant 0 : index
    %245 = vector.load %arg12[%c1_84, %c0_85, %c0_86] : memref<2x8x512xf32, #tpu.memory_space<vmem>>, vector<1x8x256xf32>
    %246 = vector.shape_cast %245 : vector<1x8x256xf32> to vector<8x256xf32>
    %247 = vector.shape_cast %244 : vector<8x256xf32> to vector<1x8x256xf32>
    tpu.vector_store %arg12[%c1_84, %c0_85, %c0_86], %247 {strides = array<i32>} : memref<2x8x512xf32, #tpu.memory_space<vmem>>, vector<1x8x256xf32>,
    %c1_87 = arith.constant 1 : index
    %c0_88 = arith.constant 0 : index
    %c256_89 = arith.constant 256 : index
    %248 = vector.load %arg12[%c1_87, %c0_88, %c256_89] : memref<2x8x512xf32, #tpu.memory_space<vmem>>, vector<1x8x256xf32>
    %249 = vector.shape_cast %248 : vector<1x8x256xf32> to vector<8x256xf32>
    %250 = vector.shape_cast %242 : vector<8x256xf32> to vector<1x8x256xf32>
    tpu.vector_store %arg12[%c1_87, %c0_88, %c256_89], %250 {strides = array<i32>} : memref<2x8x512xf32, #tpu.memory_space<vmem>>, vector<1x8x256xf32>,
    return
  }
  func.func @transform_0(%arg0: i32) -> (i32, i32) {
    %c0_i32 = arith.constant 0 : i32
    %c0_i32_0 = arith.constant 0 : i32
    %c0_i32_1 = arith.constant 0 : i32
    return %c0_i32, %c0_i32_0 : i32, i32
  }
  func.func @transform_1(%arg0: i32) -> (i32, i32, i32) {
    %c0_i32 = arith.constant 0 : i32
    %c0_i32_0 = arith.constant 0 : i32
    %c0_i32_1 = arith.constant 0 : i32
    return %arg0, %c0_i32, %c0_i32_0 : i32, i32, i32
  }
  func.func @transform_2(%arg0: i32) -> (i32, i32) {
    %c0_i32 = arith.constant 0 : i32
    %c0_i32_0 = arith.constant 0 : i32
    %c0_i32_1 = arith.constant 0 : i32
    return %c0_i32, %c0_i32_0 : i32, i32
  }
  func.func @transform_3(%arg0: i32) -> (i32, i32) {
    %c0_i32 = arith.constant 0 : i32
    %c0_i32_0 = arith.constant 0 : i32
    %c0_i32_1 = arith.constant 0 : i32
    return %c0_i32, %c0_i32_0 : i32, i32
  }
  func.func @transform_4(%arg0: i32) -> (i32, i32) {
    %c0_i32 = arith.constant 0 : i32
    %c0_i32_0 = arith.constant 0 : i32
    %c0_i32_1 = arith.constant 0 : i32
    return %c0_i32, %c0_i32_0 : i32, i32
  }
  func.func @transform_5(%arg0: i32) -> (i32, i32) {
    %c0_i32 = arith.constant 0 : i32
    %c0_i32_0 = arith.constant 0 : i32
    %c0_i32_1 = arith.constant 0 : i32
    return %c0_i32, %c0_i32_0 : i32, i32
  }
  func.func @transform_6(%arg0: i32) -> (i32, i32) {
    %c0_i32 = arith.constant 0 : i32
    %c0_i32_0 = arith.constant 0 : i32
    %c0_i32_1 = arith.constant 0 : i32
    return %c0_i32, %c0_i32_0 : i32, i32
  }
  func.func @transform_7(%arg0: i32) -> (i32, i32) {
    %c0_i32 = arith.constant 0 : i32
    %c0_i32_0 = arith.constant 0 : i32
    %c0_i32_1 = arith.constant 0 : i32
    return %c0_i32, %c0_i32_0 : i32, i32
  }
  func.func @transform_8(%arg0: i32) -> (i32, i32) {
    %c0_i32 = arith.constant 0 : i32
    %c0_i32_0 = arith.constant 0 : i32
    %c0_i32_1 = arith.constant 0 : i32
    return %c0_i32, %c0_i32_0 : i32, i32
  }
  func.func @transform_9(%arg0: i32) -> (i32, i32) {
    %c0_i32 = arith.constant 0 : i32
    %c0_i32_0 = arith.constant 0 : i32
    %c0_i32_1 = arith.constant 0 : i32
    return %c0_i32, %c0_i32_0 : i32, i32
  }
  func.func @transform_10(%arg0: i32) -> (i32, i32) {
    %c0_i32 = arith.constant 0 : i32
    %c0_i32_0 = arith.constant 0 : i32
    %c0_i32_1 = arith.constant 0 : i32
    return %c0_i32, %c0_i32_0 : i32, i32
  }
  func.func @transform_11(%arg0: i32) -> (i32, i32, i32) {
    %c0_i32 = arith.constant 0 : i32
    %c0_i32_0 = arith.constant 0 : i32
    %c0_i32_1 = arith.constant 0 : i32
    return %arg0, %c0_i32, %c0_i32_0 : i32, i32, i32
  }
}

</mosaic_0001>

<llo_original>
// kernel: inverted_residual.1
$region0: #{inverted_residual.1}
  #allocation0 [shape = 'u32[]', space=smem, size = 0x4, offset = 0x4, fixed_abs, tag = 'smem constant byte address 0x4 - core index']
  #allocation1 [shape = 'u32[144,128]{1,0:T(1,128)}', space=vmem, size = 0x12000, scoped, tag = 'internal scratch']
  %s0 = inlined_call_operand.vmem [shape: s32[1,512], index: 0, kind: input, shape index: {}]
  %s1 = inlined_call_operand.vmem [shape: f32[4,16,256], index: 1, kind: input, shape index: {}]
  %s2 = inlined_call_operand.vmem [shape: bf16[8,8], index: 2, kind: input, shape index: {}]
  %s3 = inlined_call_operand.vmem [shape: f32[8,9], index: 3, kind: input, shape index: {}]
  %s4 = inlined_call_operand.vmem [shape: f32[16,4], index: 4, kind: input, shape index: {}]
  %s5 = inlined_call_operand.vmem [shape: f32[16,4], index: 5, kind: input, shape index: {}]
  %s6 = inlined_call_operand.vmem [shape: bf16[8,8], index: 6, kind: input, shape index: {}]
  %s7 = inlined_call_operand.vmem [shape: bf16[8,8], index: 7, kind: input, shape index: {}]
  %s8 = inlined_call_operand.vmem [shape: f32[16,2], index: 8, kind: input, shape index: {}]
  %s9 = inlined_call_operand.vmem [shape: f32[1,4], index: 9, kind: input, shape index: {}]
  %s10 = inlined_call_operand.vmem [shape: f32[8,1], index: 10, kind: input, shape index: {}]
  %s11 = inlined_call_operand.vmem [shape: f32[4,8,512], index: 11, kind: output, shape index: {}]
  %s12 = sld [smem:[#allocation0]]
  $region77: #{inverted_residual.1} parent=0
    _
  %s14 = ssub.s32 1, %s12
  %s15 = scalar_select 0, %s14, %s12
  loop: start=0, step=1, limit=4
  $region2: #{inverted_residual.1} parent=0 // loop_pre_header
    _
  $region3: #{inverted_residual.1} parent=0 // loop_header
    %s17 = sphi 0, %s21
    %p18 = scmp.ge.s32.totalorder %s17, 4
    %s25 = sphi 0, %s25
    %s27 = sphi 0, %s25
    %s28 = sphi 0, %s27
    %s42 = sphi 0, %s28
    %s48 = sphi 0, %s50
    %s51 = sphi 0, %s48
    %s52 = sphi 0, %s51
    %s68 = sphi 0, %s52
    %s72 = sphi 0, %s72
    %s74 = sphi 0, %s72
    %s75 = sphi 0, %s74
    %s89 = sphi 0, %s75
    %s93 = sphi 0, %s93
    %s95 = sphi 0, %s93
    %s96 = sphi 0, %s95
    %s110 = sphi 0, %s96
    %s114 = sphi 0, %s114
    %s116 = sphi 0, %s114
    %s117 = sphi 0, %s116
    %s131 = sphi 0, %s117
    %s135 = sphi 0, %s135
    %s137 = sphi 0, %s135
    %s138 = sphi 0, %s137
    %s152 = sphi 0, %s138
    %s156 = sphi 0, %s156
    %s158 = sphi 0, %s156
    %s159 = sphi 0, %s158
    %s173 = sphi 0, %s159
    %s177 = sphi 0, %s177
    %s179 = sphi 0, %s177
    %s180 = sphi 0, %s179
    %s194 = sphi 0, %s180
    %s198 = sphi 0, %s198
    %s200 = sphi 0, %s198
    %s201 = sphi 0, %s200
    %s215 = sphi 0, %s201
    %s219 = sphi 0, %s219
    %s221 = sphi 0, %s219
    %s222 = sphi 0, %s221
    %s236 = sphi 0, %s222
    %s240 = sphi 0, %s240
    %s242 = sphi 0, %s240
    %s243 = sphi 0, %s242
    %s257 = sphi 0, %s243
    %s263 = sphi 0, %s265
    %s266 = sphi 0, %s263
    %s267 = sphi 0, %s266
    %s283 = sphi 0, %s267
  $region4: #{inverted_residual.1} parent=0 // loop_header_branch
    %20 = sbr.rel (%p18) target = $region8
  $region5: #{inverted_residual.1} parent=0 // loop_body
    %s22 = ssub.s32 %s17, 1
    %s23 = ssub.s32 %s17, 2
    %s24 = sadd.s32 %s17, 1
    %s26 = sadd.s32 %s25, 1
    %p29 = scmp.eq.s32.totalorder %s17, 1
    %p30 = scmp.ne.s32.totalorder %s25, %s27
    %p31 = scmp.eq.s32.totalorder %s17, 0
    %p32 = por %p30, %p31
    %p33 = scmp.ne.s32.totalorder %s25, %s27
    %p34 = scmp.eq.s32.totalorder %s22, 1
    %p35 = por %p33, %p34
    %p36 = scmp.ne.s32.totalorder %s27, %s28
    %p37 = scmp.eq.s32.totalorder %s22, 0
    %p38 = por %p36, %p37
    %p39 = scmp.ne.s32.totalorder %s27, %s28
    %p40 = scmp.eq.s32.totalorder %s23, 1
    %p41 = por %p39, %p40
    %p43 = scmp.ne.s32.totalorder %s28, %s42
    %p44 = scmp.eq.s32.totalorder %s23, 0
    %p45 = por %p43, %p44
    %s46 = ssub.s32 %s17, %s24
    %p47 = scmp.eq.s32.totalorder %s46, 0
    %s49 = sadd.s32 %s48, 1
    %s50 = scalar_select %p47, %s48, %s49
    %p53 = pneg %p47
    %p54 = scmp.eq.s32.totalorder %s17, 1
    %p55 = por %p53, %p54
    %p56 = scmp.ne.s32.totalorder %s48, %s51
    %p57 = scmp.eq.s32.totalorder %s17, 0
    %p58 = por %p56, %p57
    %p59 = scmp.ne.s32.totalorder %s48, %s51
    %p60 = scmp.eq.s32.totalorder %s22, 1
    %p61 = por %p59, %p60
    %p62 = scmp.ne.s32.totalorder %s51, %s52
    %p63 = scmp.eq.s32.totalorder %s22, 0
    %p64 = por %p62, %p63
    %p65 = scmp.ne.s32.totalorder %s51, %s52
    %p66 = scmp.eq.s32.totalorder %s23, 1
    %p67 = por %p65, %p66
    %p69 = scmp.ne.s32.totalorder %s52, %s68
    %p70 = scmp.eq.s32.totalorder %s23, 0
    %p71 = por %p69, %p70
    %s73 = sadd.s32 %s72, 1
    %p76 = scmp.eq.s32.totalorder %s17, 1
    %p77 = scmp.ne.s32.totalorder %s72, %s74
    %p78 = scmp.eq.s32.totalorder %s17, 0
    %p79 = por %p77, %p78
    %p80 = scmp.ne.s32.totalorder %s72, %s74
    %p81 = scmp.eq.s32.totalorder %s22, 1
    %p82 = por %p80, %p81
    %p83 = scmp.ne.s32.totalorder %s74, %s75
    %p84 = scmp.eq.s32.totalorder %s22, 0
    %p85 = por %p83, %p84
    %p86 = scmp.ne.s32.totalorder %s74, %s75
    %p87 = scmp.eq.s32.totalorder %s23, 1
    %p88 = por %p86, %p87
    %p90 = scmp.ne.s32.totalorder %s75, %s89
    %p91 = scmp.eq.s32.totalorder %s23, 0
    %p92 = por %p90, %p91
    %s94 = sadd.s32 %s93, 1
    %p97 = scmp.eq.s32.totalorder %s17, 1
    %p98 = scmp.ne.s32.totalorder %s93, %s95
    %p99 = scmp.eq.s32.totalorder %s17, 0
    %p100 = por %p98, %p99
    %p101 = scmp.ne.s32.totalorder %s93, %s95
    %p102 = scmp.eq.s32.totalorder %s22, 1
    %p103 = por %p101, %p102
    %p104 = scmp.ne.s32.totalorder %s95, %s96
    %p105 = scmp.eq.s32.totalorder %s22, 0
    %p106 = por %p104, %p105
    %p107 = scmp.ne.s32.totalorder %s95, %s96
    %p108 = scmp.eq.s32.totalorder %s23, 1
    %p109 = por %p107, %p108
    %p111 = scmp.ne.s32.totalorder %s96, %s110
    %p112 = scmp.eq.s32.totalorder %s23, 0
    %p113 = por %p111, %p112
    %s115 = sadd.s32 %s114, 1
    %p118 = scmp.eq.s32.totalorder %s17, 1
    %p119 = scmp.ne.s32.totalorder %s114, %s116
    %p120 = scmp.eq.s32.totalorder %s17, 0
    %p121 = por %p119, %p120
    %p122 = scmp.ne.s32.totalorder %s114, %s116
    %p123 = scmp.eq.s32.totalorder %s22, 1
    %p124 = por %p122, %p123
    %p125 = scmp.ne.s32.totalorder %s116, %s117
    %p126 = scmp.eq.s32.totalorder %s22, 0
    %p127 = por %p125, %p126
    %p128 = scmp.ne.s32.totalorder %s116, %s117
    %p129 = scmp.eq.s32.totalorder %s23, 1
    %p130 = por %p128, %p129
    %p132 = scmp.ne.s32.totalorder %s117, %s131
    %p133 = scmp.eq.s32.totalorder %s23, 0
    %p134 = por %p132, %p133
    %s136 = sadd.s32 %s135, 1
    %p139 = scmp.eq.s32.totalorder %s17, 1
    %p140 = scmp.ne.s32.totalorder %s135, %s137
    %p141 = scmp.eq.s32.totalorder %s17, 0
    %p142 = por %p140, %p141
    %p143 = scmp.ne.s32.totalorder %s135, %s137
    %p144 = scmp.eq.s32.totalorder %s22, 1
    %p145 = por %p143, %p144
    %p146 = scmp.ne.s32.totalorder %s137, %s138
    %p147 = scmp.eq.s32.totalorder %s22, 0
    %p148 = por %p146, %p147
    %p149 = scmp.ne.s32.totalorder %s137, %s138
    %p150 = scmp.eq.s32.totalorder %s23, 1
    %p151 = por %p149, %p150
    %p153 = scmp.ne.s32.totalorder %s138, %s152
    %p154 = scmp.eq.s32.totalorder %s23, 0
    %p155 = por %p153, %p154
    %s157 = sadd.s32 %s156, 1
    %p160 = scmp.eq.s32.totalorder %s17, 1
    %p161 = scmp.ne.s32.totalorder %s156, %s158
    %p162 = scmp.eq.s32.totalorder %s17, 0
    %p163 = por %p161, %p162
    %p164 = scmp.ne.s32.totalorder %s156, %s158
    %p165 = scmp.eq.s32.totalorder %s22, 1
    %p166 = por %p164, %p165
    %p167 = scmp.ne.s32.totalorder %s158, %s159
    %p168 = scmp.eq.s32.totalorder %s22, 0
    %p169 = por %p167, %p168
    %p170 = scmp.ne.s32.totalorder %s158, %s159
    %p171 = scmp.eq.s32.totalorder %s23, 1
    %p172 = por %p170, %p171
    %p174 = scmp.ne.s32.totalorder %s159, %s173
    %p175 = scmp.eq.s32.totalorder %s23, 0
    %p176 = por %p174, %p175
    %s178 = sadd.s32 %s177, 1
    %p181 = scmp.eq.s32.totalorder %s17, 1
    %p182 = scmp.ne.s32.totalorder %s177, %s179
    %p183 = scmp.eq.s32.totalorder %s17, 0
    %p184 = por %p182, %p183
    %p185 = scmp.ne.s32.totalorder %s177, %s179
    %p186 = scmp.eq.s32.totalorder %s22, 1
    %p187 = por %p185, %p186
    %p188 = scmp.ne.s32.totalorder %s179, %s180
    %p189 = scmp.eq.s32.totalorder %s22, 0
    %p190 = por %p188, %p189
    %p191 = scmp.ne.s32.totalorder %s179, %s180
    %p192 = scmp.eq.s32.totalorder %s23, 1
    %p193 = por %p191, %p192
    %p195 = scmp.ne.s32.totalorder %s180, %s194
    %p196 = scmp.eq.s32.totalorder %s23, 0
    %p197 = por %p195, %p196
    %s199 = sadd.s32 %s198, 1
    %p202 = scmp.eq.s32.totalorder %s17, 1
    %p203 = scmp.ne.s32.totalorder %s198, %s200
    %p204 = scmp.eq.s32.totalorder %s17, 0
    %p205 = por %p203, %p204
    %p206 = scmp.ne.s32.totalorder %s198, %s200
    %p207 = scmp.eq.s32.totalorder %s22, 1
    %p208 = por %p206, %p207
    %p209 = scmp.ne.s32.totalorder %s200, %s201
    %p210 = scmp.eq.s32.totalorder %s22, 0
    %p211 = por %p209, %p210
    %p212 = scmp.ne.s32.totalorder %s200, %s201
    %p213 = scmp.eq.s32.totalorder %s23, 1
    %p214 = por %p212, %p213
    %p216 = scmp.ne.s32.totalorder %s201, %s215
    %p217 = scmp.eq.s32.totalorder %s23, 0
    %p218 = por %p216, %p217
    %s220 = sadd.s32 %s219, 1
    %p223 = scmp.eq.s32.totalorder %s17, 1
    %p224 = scmp.ne.s32.totalorder %s219, %s221
    %p225 = scmp.eq.s32.totalorder %s17, 0
    %p226 = por %p224, %p225
    %p227 = scmp.ne.s32.totalorder %s219, %s221
    %p228 = scmp.eq.s32.totalorder %s22, 1
    %p229 = por %p227, %p228
    %p230 = scmp.ne.s32.totalorder %s221, %s222
    %p231 = scmp.eq.s32.totalorder %s22, 0
    %p232 = por %p230, %p231
    %p233 = scmp.ne.s32.totalorder %s221, %s222
    %p234 = scmp.eq.s32.totalorder %s23, 1
    %p235 = por %p233, %p234
    %p237 = scmp.ne.s32.totalorder %s222, %s236
    %p238 = scmp.eq.s32.totalorder %s23, 0
    %p239 = por %p237, %p238
    %s241 = sadd.s32 %s240, 1
    %p244 = scmp.eq.s32.totalorder %s17, 1
    %p245 = scmp.ne.s32.totalorder %s240, %s242
    %p246 = scmp.eq.s32.totalorder %s17, 0
    %p247 = por %p245, %p246
    %p248 = scmp.ne.s32.totalorder %s240, %s242
    %p249 = scmp.eq.s32.totalorder %s22, 1
    %p250 = por %p248, %p249
    %p251 = scmp.ne.s32.totalorder %s242, %s243
    %p252 = scmp.eq.s32.totalorder %s22, 0
    %p253 = por %p251, %p252
    %p254 = scmp.ne.s32.totalorder %s242, %s243
    %p255 = scmp.eq.s32.totalorder %s23, 1
    %p256 = por %p254, %p255
    %p258 = scmp.ne.s32.totalorder %s243, %s257
    %p259 = scmp.eq.s32.totalorder %s23, 0
    %p260 = por %p258, %p259
    %s261 = ssub.s32 %s17, %s24
    %p262 = scmp.eq.s32.totalorder %s261, 0
    %s264 = sadd.s32 %s263, 1
    %s265 = scalar_select %p262, %s263, %s264
    %p268 = pneg %p262
    %p269 = scmp.eq.s32.totalorder %s17, 1
    %p270 = por %p268, %p269
    %p271 = scmp.ne.s32.totalorder %s263, %s266
    %p272 = scmp.eq.s32.totalorder %s17, 0
    %p273 = por %p271, %p272
    %p274 = scmp.ne.s32.totalorder %s263, %s266
    %p275 = scmp.eq.s32.totalorder %s22, 1
    %p276 = por %p274, %p275
    %p277 = scmp.ne.s32.totalorder %s266, %s267
    %p278 = scmp.eq.s32.totalorder %s22, 0
    %p279 = por %p277, %p278
    %p280 = scmp.ne.s32.totalorder %s266, %s267
    %p281 = scmp.eq.s32.totalorder %s23, 1
    %p282 = por %p280, %p281
    %p284 = scmp.ne.s32.totalorder %s267, %s283
    %p285 = scmp.eq.s32.totalorder %s23, 0
    %p286 = por %p284, %p285
    %p287 = scmp.le.s32.totalorder 1, %s17
    %p288 = scmp.lt.s32.totalorder %s17, 3
    %p289 = pnand %p287, %p288
    %p290 = pneg %p289
    // Predicated region
    $region9: #{inverted_residual.1} parent=5 // pred_check
      _
    $region10: #{inverted_residual.1} parent=5 // pred_check_branch
      %292 = sbr.rel (%p289) target = $region12
    $region11: #{inverted_residual.1} parent=5 // pred_region
      %s293 = ssub.s32 %s17, 1
      // Predicated region
      $region13: #{inverted_residual.1} parent=11 // pred_check
        %p294 = pneg %p38
      $region14: #{inverted_residual.1} parent=11 // pred_check_branch
        %296 = sbr.rel (%p294) target = $region16
      $region15: #{inverted_residual.1} parent=11 // pred_region
        _
      $region16: #{inverted_residual.1} parent=11 // pred_fallthru
        _
      // Predicated region
      $region17: #{inverted_residual.1} parent=11 // pred_check
        %p297 = pneg %p85
      $region18: #{inverted_residual.1} parent=11 // pred_check_branch
        %299 = sbr.rel (%p297) target = $region20
      $region19: #{inverted_residual.1} parent=11 // pred_region
        _
      $region20: #{inverted_residual.1} parent=11 // pred_fallthru
        _
      // Predicated region
      $region21: #{inverted_residual.1} parent=11 // pred_check
        %p300 = pneg %p106
      $region22: #{inverted_residual.1} parent=11 // pred_check_branch
        %302 = sbr.rel (%p300) target = $region24
      $region23: #{inverted_residual.1} parent=11 // pred_region
        _
      $region24: #{inverted_residual.1} parent=11 // pred_fallthru
        _
      // Predicated region
      $region25: #{inverted_residual.1} parent=11 // pred_check
        %p303 = pneg %p127
      $region26: #{inverted_residual.1} parent=11 // pred_check_branch
        %305 = sbr.rel (%p303) target = $region28
      $region27: #{inverted_residual.1} parent=11 // pred_region
        _
      $region28: #{inverted_residual.1} parent=11 // pred_fallthru
        _
      // Predicated region
      $region29: #{inverted_residual.1} parent=11 // pred_check
        %p306 = pneg %p148
      $region30: #{inverted_residual.1} parent=11 // pred_check_branch
        %308 = sbr.rel (%p306) target = $region32
      $region31: #{inverted_residual.1} parent=11 // pred_region
        _
      $region32: #{inverted_residual.1} parent=11 // pred_fallthru
        _
      // Predicated region
      $region33: #{inverted_residual.1} parent=11 // pred_check
        %p309 = pneg %p169
      $region34: #{inverted_residual.1} parent=11 // pred_check_branch
        %311 = sbr.rel (%p309) target = $region36
      $region35: #{inverted_residual.1} parent=11 // pred_region
        _
      $region36: #{inverted_residual.1} parent=11 // pred_fallthru
        _
      // Predicated region
      $region37: #{inverted_residual.1} parent=11 // pred_check
        %p312 = pneg %p190
      $region38: #{inverted_residual.1} parent=11 // pred_check_branch
        %314 = sbr.rel (%p312) target = $region40
      $region39: #{inverted_residual.1} parent=11 // pred_region
        _
      $region40: #{inverted_residual.1} parent=11 // pred_fallthru
        _
      // Predicated region
      $region41: #{inverted_residual.1} parent=11 // pred_check
        %p315 = pneg %p211
      $region42: #{inverted_residual.1} parent=11 // pred_check_branch
        %317 = sbr.rel (%p315) target = $region44
      $region43: #{inverted_residual.1} parent=11 // pred_region
        _
      $region44: #{inverted_residual.1} parent=11 // pred_fallthru
        _
      // Predicated region
      $region45: #{inverted_residual.1} parent=11 // pred_check
        %p318 = pneg %p232
      $region46: #{inverted_residual.1} parent=11 // pred_check_branch
        %320 = sbr.rel (%p318) target = $region48
      $region47: #{inverted_residual.1} parent=11 // pred_region
        _
      $region48: #{inverted_residual.1} parent=11 // pred_fallthru
        _
      // Predicated region
      $region49: #{inverted_residual.1} parent=11 // pred_check
        %p321 = pneg %p253
      $region50: #{inverted_residual.1} parent=11 // pred_check_branch
        %323 = sbr.rel (%p321) target = $region52
      $region51: #{inverted_residual.1} parent=11 // pred_region
        _
      $region52: #{inverted_residual.1} parent=11 // pred_fallthru
        _
    $region12: #{inverted_residual.1} parent=5 // pred_fallthru
      _
    %p324 = scmp.lt.s32.totalorder %s17, 2
    // Predicated region
    $region53: #{inverted_residual.1} parent=5 // pred_check
      %p325 = pneg %p324
    $region54: #{inverted_residual.1} parent=5 // pred_check_branch
      %327 = sbr.rel (%p325) target = $region56
    $region55: #{inverted_residual.1} parent=5 // pred_region
      // Predicated region
      $region57: #{inverted_residual.1} parent=55 // pred_check
        %p328 = pneg %p58
      $region58: #{inverted_residual.1} parent=55 // pred_check_branch
        %330 = sbr.rel (%p328) target = $region60
      $region59: #{inverted_residual.1} parent=55 // pred_region
        %s331 = smul.u32 2, %s17
        %p332 = scmp.lt.s32.totalorder %s331, 3
        %s333 = scalar_select %p332, %s331, 3
        %s334 = smul.addr %s333, 4
        %s335 = smul.addr %s334, 8
        %s336 = scalar_lea.vmem %s1, %s335
        %s337 = smul.u32 2, %s17
      $region60: #{inverted_residual.1} parent=55 // pred_fallthru
        _
    $region56: #{inverted_residual.1} parent=5 // pred_fallthru
      _
    %p338 = scmp.le.s32.totalorder 1, %s17
    %p339 = scmp.lt.s32.totalorder %s17, 3
    %p340 = pnand %p338, %p339
    %p341 = pneg %p340
    // Predicated region
    $region61: #{inverted_residual.1} parent=5 // pred_check
      _
    $region62: #{inverted_residual.1} parent=5 // pred_check_branch
      %343 = sbr.rel (%p340) target = $region64
    $region63: #{inverted_residual.1} parent=5 // pred_region
      %s344 = ssub.s32 %s17, 1
      %p345 = pneg %p38
      %p346 = pneg %p35
      %s347 = smul.u32 2, %s22
      %p348 = scmp.lt.s32.totalorder %s347, 3
      %s349 = scalar_select %p348, %s347, 3
      %s350 = smul.addr %s349, 4
      %s351 = smul.addr %s350, 8
      %s352 = scalar_lea.vmem %s1, %s351
      %p353 = pneg %p64
      %p354 = pneg %p61
      %p355 = pneg %p85
      %p356 = pneg %p82
      %p357 = pneg %p106
      %p358 = pneg %p103
      %p359 = pneg %p127
      %p360 = pneg %p124
      %p361 = pneg %p148
      %p362 = pneg %p145
      %p363 = pneg %p169
      %p364 = pneg %p166
      %p365 = pneg %p190
      %p366 = pneg %p187
      %p367 = pneg %p211
      %p368 = pneg %p208
      %p369 = pneg %p232
      %p370 = pneg %p229
      %p371 = pneg %p253
      %p372 = pneg %p250
      %p373 = pneg %p279
      %p374 = pneg %p276
      %s375 = smul.u32 2, %s22
      %p376 = scmp.lt.s32.totalorder %s375, 3
      %s377 = scalar_select %p376, %s375, 3
      %s378 = smul.addr %s377, 4
      %s379 = smul.addr %s378, 8
      %s380 = scalar_lea.vmem %s11, %s379
      %s381 = smul.u32 2, %s22
      %p382 = scmp.lt.s32.totalorder %s381, 3
      %s383 = scalar_select %p382, %s381, 3
      %s384 = smul.addr %s383, 4
      %s385 = smul.addr %s384, 8
      %s386 = scalar_lea.vmem %s1, %s385
      %s387 = smul.u32 2, %s22
      %s388 = smul.u32 2, %s22
      %p389 = scmp.lt.s32.totalorder %s388, 3
      %s390 = scalar_select %p389, %s388, 3
      %s391 = smul.addr %s390, 4
      %s392 = smul.addr %s391, 8
      %s393 = scalar_lea.vmem %s11, %s392
      %s394 = smul.u32 2, %s22
      %v396 = vld [vmem:[%s8] sm:$0xff]
      %v397 = vld [vmem:[%s8 + $0x8] sm:$0xff]
      %v398 = vld [vmem:[%s9] sm:$0x1]
      %v399 = vld [vmem:[%s10] sm:$0xff]
      %v400 = vld [vmem:[%s386 + $0x10] sm:$0xff]
      %v401 = vld [vmem:[%s386 + $0x18] sm:$0xff]
      %s402 = scalar_lea.vmem %s386, 32
      %v403 = vld [vmem:[%s402 + $0x10] sm:$0xff]
      %v404 = vld [vmem:[%s402 + $0x18] sm:$0xff]
      %v405 = vpack.c.bf16 %v400, %v400
      %v406 = vpack.c.bf16 %v401, %v401
      %v407 = vpack.c.bf16 %v403, %v403
      %v408 = vpack.c.bf16 %v404, %v404
      %v409 = vld [vmem:[%s2] sm:$0xf]
      %411 = vset.pattern.permute.xlu0 0
      %412 = vperm.xlu0 %411, %v396
      %v413 = vpop.permute.xlu0 %412
      %vm415 = vcmask 64512
      %v417 = vsel %vm415, %v409, 0
      %vm419 = vcmask 1043456
      %v421 = vsel %vm419, %v405, 0
      %v424 = vsel %vm419, %v406, 0
      %v427 = vsel %vm419, %v407, 0
      %v430 = vsel %vm419, %v408, 0
      %432 = vmatprep.subr.bf16.mxu0 %v424
      %433 = vmatpush1.bf16.msra.mxu0 %v421
      %434 = vmatprep.subr.bf16.mxu0 0
      %435 = vmatpush1.bf16.msra.mxu0 0
      %436 = vmatprep.subr.bf16.mxu0 0
      %437 = vmatpush1.bf16.msra.mxu0 0
      %438 = vmatprep.subr.bf16.mxu0 0
      %439 = vmatpush1.bf16.msra.mxu0 0
      %440 = vmatprep.subr.bf16.mxu0 0
      %441 = vmatpush1.bf16.msra.mxu0 0
      %442 = vmatprep.subr.bf16.mxu0 0
      %443 = vmatpush1.bf16.msra.mxu0 0
      %444 = vmatprep.subr.bf16.mxu0 0
      %445 = vmatpush1.bf16.msra.mxu0 0
      %446 = vmatprep.subr.bf16.mxu0 0
      %447 = vmatpush1.bf16.msra.mxu0 0
      %448 = vmatprep.subr.bf16.mxu0 0
      %449 = vmatpush1.bf16.msra.mxu0 0
      %450 = vmatprep.subr.bf16.mxu0 0
      %451 = vmatpush1.bf16.msra.mxu0 0
      %452 = vmatprep.subr.bf16.mxu0 0
      %453 = vmatpush1.bf16.msra.mxu0 0
      %454 = vmatprep.subr.bf16.mxu0 0
      %455 = vmatpush1.bf16.msra.mxu0 0
      %456 = vmatprep.subr.bf16.mxu0 0
      %457 = vmatpush1.bf16.msra.mxu0 0
      %458 = vmatprep.subr.bf16.mxu0 0
      %459 = vmatpush1.bf16.msra.mxu0 0
      %460 = vmatprep.subr.bf16.mxu0 0
      %461 = vmatpush1.bf16.msra.mxu0 0
      %462 = vmatprep.subr.bf16.mxu0 0
      %463 = vmatpush1.bf16.msra.mxu0 0
      %464 = vmatprep.mubr.bf16.mxu0 0
      %465 = vmatmul.mubr.bf16.gmra.mrb[0].mxu0 %v417
      %v466 = vpop.f32.mrb[0].mxu0
      %v467 = vadd.f32 %v413, %v466
      %v468 = vpop.f32.mrb[0].mxu0
      %v469 = vadd.f32 %v413, %v468
      %v470 = vpop.f32.mrb[0].mxu0
      %v471 = vpop.f32.mrb[0].mxu0
      %472 = vdwg.mxu0
      %473 = vmatprep.subr.bf16.mxu0 %v430
      %474 = vmatpush1.bf16.msra.mxu0 %v427
      %475 = vmatprep.subr.bf16.mxu0 0
      %476 = vmatpush1.bf16.msra.mxu0 0
      %477 = vmatprep.subr.bf16.mxu0 0
      %478 = vmatpush1.bf16.msra.mxu0 0
      %479 = vmatprep.subr.bf16.mxu0 0
      %480 = vmatpush1.bf16.msra.mxu0 0
      %481 = vmatprep.subr.bf16.mxu0 0
      %482 = vmatpush1.bf16.msra.mxu0 0
      %483 = vmatprep.subr.bf16.mxu0 0
      %484 = vmatpush1.bf16.msra.mxu0 0
      %485 = vmatprep.subr.bf16.mxu0 0
      %486 = vmatpush1.bf16.msra.mxu0 0
      %487 = vmatprep.subr.bf16.mxu0 0
      %488 = vmatpush1.bf16.msra.mxu0 0
      %489 = vmatprep.subr.bf16.mxu0 0
      %490 = vmatpush1.bf16.msra.mxu0 0
      %491 = vmatprep.subr.bf16.mxu0 0
      %492 = vmatpush1.bf16.msra.mxu0 0
      %493 = vmatprep.subr.bf16.mxu0 0
      %494 = vmatpush1.bf16.msra.mxu0 0
      %495 = vmatprep.subr.bf16.mxu0 0
      %496 = vmatpush1.bf16.msra.mxu0 0
      %497 = vmatprep.subr.bf16.mxu0 0
      %498 = vmatpush1.bf16.msra.mxu0 0
      %499 = vmatprep.subr.bf16.mxu0 0
      %500 = vmatpush1.bf16.msra.mxu0 0
      %501 = vmatprep.subr.bf16.mxu0 0
      %502 = vmatpush1.bf16.msra.mxu0 0
      %503 = vmatprep.subr.bf16.mxu0 0
      %504 = vmatpush1.bf16.msra.mxu0 0
      %505 = vmatprep.mubr.bf16.mxu0 0
      %506 = vmatmul.mubr.bf16.gmra.mrb[0].mxu0 %v417
      %v507 = vpop.f32.mrb[0].mxu0
      %v508 = vadd.f32 %v413, %v507
      %v509 = vpop.f32.mrb[0].mxu0
      %v510 = vadd.f32 %v413, %v509
      %v511 = vpop.f32.mrb[0].mxu0
      %v512 = vpop.f32.mrb[0].mxu0
      %513 = vdwg.mxu0
      %v514 = vmax.f32 %v467, 0.0
      %v515 = vmax.f32 %v469, 0.0
      %v516 = vmax.f32 %v508, 0.0
      %v517 = vmax.f32 %v510, 0.0
      %v518 = vld [vmem:[%s0] sm:$0xf]
      %v519 = vand.u32 %v518, 1
      %vm520 = vcmp.ne.s32.totalorder %v519, 0
      %v521 = vand.u32 %v518, 2
      %vm522 = vcmp.ne.s32.totalorder %v521, 0
      %v523 = vand.u32 %v518, 4
      %vm524 = vcmp.ne.s32.totalorder %v523, 0
      %v525 = vand.u32 %v518, 8
      %vm526 = vcmp.ne.s32.totalorder %v525, 0
      %v527 = vld [vmem:[%s3] sm:$0xff]
      %528 = vrot.lane.b32.xlu0 %v514, 17
      %v529 = vpop.permute.xlu0 %528
      %530 = vrot.lane.b32.xlu0 %v515, 17
      %v531 = vpop.permute.xlu0 %530
      %532 = vrot.lane.b32.xlu0 %v516, 17
      %v533 = vpop.permute.xlu0 %532
      %534 = vrot.lane.b32.xlu0 %v517, 17
      %v535 = vpop.permute.xlu0 %534
      %v536 = vlaneseq
      %v537 = vand.u32 %v536, 127
      %vm538 = vcmp.lt.s32.totalorder %v537, 17
      %v539 = vsel %vm538, %v533, %v535
      %v540 = vsel %vm538, %v531, %v533
      %v541 = vsel %vm538, %v529, %v531
      %v542 = vsel %vm538, %v535, %v529
      %vm543 = vmand %vm520, %vm524
      %v544 = vsel %vm543, 1, 0
      %v545 = vlaneseq
      %v546 = vshrl.u32 %v545, 7
      %v547 = vsub.s32 0, %v546
      %v548 = vrot.slane %v544, %v547
      %v549 = vlaneseq
      %v550 = vshrl.u32 %v549, 7
      %v551 = vsub.s32 1, %v550
      %v552 = vrot.slane %v544, %v551
      %v553 = vlaneseq
      %v554 = vshrl.u32 %v553, 7
      %v555 = vsub.s32 2, %v554
      %v556 = vrot.slane %v544, %v555
      %v557 = vlaneseq
      %v558 = vshrl.u32 %v557, 7
      %v559 = vsub.s32 3, %v558
      %v560 = vrot.slane %v544, %v559
      %vm561 = vcmp.eq.s32.totalorder %v548, 1
      %vm562 = vcmp.eq.s32.totalorder %v552, 1
      %vm563 = vcmp.eq.s32.totalorder %v556, 1
      %vm564 = vcmp.eq.s32.totalorder %v560, 1
      %v565 = vsel %vm561, %v542, 0.0
      %v566 = vsel %vm562, %v541, 0.0
      %v567 = vsel %vm563, %v540, 0.0
      %v568 = vsel %vm564, %v539, 0.0
      %570 = vset.pattern.permute.xlu0 0
      %571 = vperm.xlu0 %570, %v527
      %v572 = vpop.permute.xlu0 %571
      %v574 = vmul.f32 %v572, %v565
      %v575 = vmul.f32 %v572, %v566
      %v576 = vmul.f32 %v572, %v567
      %v577 = vmul.f32 %v572, %v568
      %v578 = vadd.f32 %v574, 0.0
      %v579 = vadd.f32 %v575, 0.0
      %v580 = vadd.f32 %v576, 0.0
      %v581 = vadd.f32 %v577, 0.0
      %582 = vrot.lane.b32.xlu0 %v514, 16
      %v583 = vpop.permute.xlu0 %582
      %584 = vrot.lane.b32.xlu0 %v515, 16
      %v585 = vpop.permute.xlu0 %584
      %586 = vrot.lane.b32.xlu0 %v516, 16
      %v587 = vpop.permute.xlu0 %586
      %588 = vrot.lane.b32.xlu0 %v517, 16
      %v589 = vpop.permute.xlu0 %588
      %vm590 = vcmp.lt.s32.totalorder %v537, 16
      %v591 = vsel %vm590, %v587, %v589
      %v592 = vsel %vm590, %v585, %v587
      %v593 = vsel %vm590, %v583, %v585
      %v594 = vsel %vm590, %v589, %v583
      %v595 = vsel %vm520, 1, 0
      %v596 = vlaneseq
      %v597 = vshrl.u32 %v596, 7
      %v598 = vsub.s32 0, %v597
      %v599 = vrot.slane %v595, %v598
      %v600 = vlaneseq
      %v601 = vshrl.u32 %v600, 7
      %v602 = vsub.s32 1, %v601
      %v603 = vrot.slane %v595, %v602
      %v604 = vlaneseq
      %v605 = vshrl.u32 %v604, 7
      %v606 = vsub.s32 2, %v605
      %v607 = vrot.slane %v595, %v606
      %v608 = vlaneseq
      %v609 = vshrl.u32 %v608, 7
      %v610 = vsub.s32 3, %v609
      %v611 = vrot.slane %v595, %v610
      %vm612 = vcmp.eq.s32.totalorder %v599, 1
      %vm613 = vcmp.eq.s32.totalorder %v603, 1
      %vm614 = vcmp.eq.s32.totalorder %v607, 1
      %vm615 = vcmp.eq.s32.totalorder %v611, 1
      %v616 = vsel %vm612, %v594, 0.0
      %v617 = vsel %vm613, %v593, 0.0
      %v618 = vsel %vm614, %v592, 0.0
      %v619 = vsel %vm615, %v591, 0.0
      %620 = vset.pattern.permute.xlu0 1
      %621 = vperm.xlu0 %620, %v527
      %v622 = vpop.permute.xlu0 %621
      %v624 = vmul.f32 %v622, %v616
      %v625 = vmul.f32 %v622, %v617
      %v626 = vmul.f32 %v622, %v618
      %v627 = vmul.f32 %v622, %v619
      %v628 = vadd.f32 %v578, %v624
      %v629 = vadd.f32 %v579, %v625
      %v630 = vadd.f32 %v580, %v626
      %v631 = vadd.f32 %v581, %v627
      %632 = vrot.lane.b32.xlu0 %v514, 15
      %v633 = vpop.permute.xlu0 %632
      %634 = vrot.lane.b32.xlu0 %v515, 15
      %v635 = vpop.permute.xlu0 %634
      %636 = vrot.lane.b32.xlu0 %v516, 15
      %v637 = vpop.permute.xlu0 %636
      %638 = vrot.lane.b32.xlu0 %v517, 15
      %v639 = vpop.permute.xlu0 %638
      %vm640 = vcmp.lt.s32.totalorder %v537, 15
      %v641 = vsel %vm640, %v637, %v639
      %v642 = vsel %vm640, %v635, %v637
      %v643 = vsel %vm640, %v633, %v635
      %v644 = vsel %vm640, %v639, %v633
      %vm645 = vmand %vm520, %vm526
      %v646 = vsel %vm645, 1, 0
      %v647 = vlaneseq
      %v648 = vshrl.u32 %v647, 7
      %v649 = vsub.s32 0, %v648
      %v650 = vrot.slane %v646, %v649
      %v651 = vlaneseq
      %v652 = vshrl.u32 %v651, 7
      %v653 = vsub.s32 1, %v652
      %v654 = vrot.slane %v646, %v653
      %v655 = vlaneseq
      %v656 = vshrl.u32 %v655, 7
      %v657 = vsub.s32 2, %v656
      %v658 = vrot.slane %v646, %v657
      %v659 = vlaneseq
      %v660 = vshrl.u32 %v659, 7
      %v661 = vsub.s32 3, %v660
      %v662 = vrot.slane %v646, %v661
      %vm663 = vcmp.eq.s32.totalorder %v650, 1
      %vm664 = vcmp.eq.s32.totalorder %v654, 1
      %vm665 = vcmp.eq.s32.totalorder %v658, 1
      %vm666 = vcmp.eq.s32.totalorder %v662, 1
      %v667 = vsel %vm663, %v644, 0.0
      %v668 = vsel %vm664, %v643, 0.0
      %v669 = vsel %vm665, %v642, 0.0
      %v670 = vsel %vm666, %v641, 0.0
      %671 = vset.pattern.permute.xlu0 2
      %672 = vperm.xlu0 %671, %v527
      %v673 = vpop.permute.xlu0 %672
      %v675 = vmul.f32 %v673, %v667
      %v676 = vmul.f32 %v673, %v668
      %v677 = vmul.f32 %v673, %v669
      %v678 = vmul.f32 %v673, %v670
      %v679 = vadd.f32 %v628, %v675
      %v680 = vadd.f32 %v629, %v676
      %v681 = vadd.f32 %v630, %v677
      %v682 = vadd.f32 %v631, %v678
      %683 = vrot.lane.b32.xlu0 %v514, 1
      %v684 = vpop.permute.xlu0 %683
      %685 = vrot.lane.b32.xlu0 %v515, 1
      %v686 = vpop.permute.xlu0 %685
      %687 = vrot.lane.b32.xlu0 %v516, 1
      %v688 = vpop.permute.xlu0 %687
      %689 = vrot.lane.b32.xlu0 %v517, 1
      %v690 = vpop.permute.xlu0 %689
      %vm691 = vcmp.lt.s32.totalorder %v537, 1
      %v692 = vsel %vm691, %v688, %v690
      %v693 = vsel %vm691, %v686, %v688
      %v694 = vsel %vm691, %v684, %v686
      %v695 = vsel %vm691, %v690, %v684
      %v696 = vsel %vm524, 1, 0
      %v697 = vlaneseq
      %v698 = vshrl.u32 %v697, 7
      %v699 = vsub.s32 0, %v698
      %v700 = vrot.slane %v696, %v699
      %v701 = vlaneseq
      %v702 = vshrl.u32 %v701, 7
      %v703 = vsub.s32 1, %v702
      %v704 = vrot.slane %v696, %v703
      %v705 = vlaneseq
      %v706 = vshrl.u32 %v705, 7
      %v707 = vsub.s32 2, %v706
      %v708 = vrot.slane %v696, %v707
      %v709 = vlaneseq
      %v710 = vshrl.u32 %v709, 7
      %v711 = vsub.s32 3, %v710
      %v712 = vrot.slane %v696, %v711
      %vm713 = vcmp.eq.s32.totalorder %v700, 1
      %vm714 = vcmp.eq.s32.totalorder %v704, 1
      %vm715 = vcmp.eq.s32.totalorder %v708, 1
      %vm716 = vcmp.eq.s32.totalorder %v712, 1
      %v717 = vsel %vm713, %v695, 0.0
      %v718 = vsel %vm714, %v694, 0.0
      %v719 = vsel %vm715, %v693, 0.0
      %v720 = vsel %vm716, %v692, 0.0
      %721 = vset.pattern.permute.xlu0 3
      %722 = vperm.xlu0 %721, %v527
      %v723 = vpop.permute.xlu0 %722
      %v725 = vmul.f32 %v723, %v717
      %v726 = vmul.f32 %v723, %v718
      %v727 = vmul.f32 %v723, %v719
      %v728 = vmul.f32 %v723, %v720
      %v729 = vadd.f32 %v679, %v725
      %v730 = vadd.f32 %v680, %v726
      %v731 = vadd.f32 %v681, %v727
      %v732 = vadd.f32 %v682, %v728
      %733 = vset.pattern.permute.xlu0 4
      %734 = vperm.xlu0 %733, %v527
      %v735 = vpop.permute.xlu0 %734
      %v737 = vmul.f32 %v735, %v514
      %v738 = vmul.f32 %v735, %v515
      %v739 = vmul.f32 %v735, %v516
      %v740 = vmul.f32 %v735, %v517
      %v741 = vadd.f32 %v729, %v737
      %v742 = vadd.f32 %v730, %v738
      %v743 = vadd.f32 %v731, %v739
      %v744 = vadd.f32 %v732, %v740
      %745 = vrot.lane.b32.xlu0 %v514, 127
      %v746 = vpop.permute.xlu0 %745
      %747 = vrot.lane.b32.xlu0 %v515, 127
      %v748 = vpop.permute.xlu0 %747
      %749 = vrot.lane.b32.xlu0 %v516, 127
      %v750 = vpop.permute.xlu0 %749
      %751 = vrot.lane.b32.xlu0 %v517, 127
      %v752 = vpop.permute.xlu0 %751
      %vm753 = vcmp.lt.s32.totalorder %v537, 127
      %v754 = vsel %vm753, %v750, %v752
      %v755 = vsel %vm753, %v748, %v750
      %v756 = vsel %vm753, %v746, %v748
      %v757 = vsel %vm753, %v752, %v746
      %v758 = vsel %vm526, 1, 0
      %v759 = vlaneseq
      %v760 = vshrl.u32 %v759, 7
      %v761 = vsub.s32 0, %v760
      %v762 = vrot.slane %v758, %v761
      %v763 = vlaneseq
      %v764 = vshrl.u32 %v763, 7
      %v765 = vsub.s32 1, %v764
      %v766 = vrot.slane %v758, %v765
      %v767 = vlaneseq
      %v768 = vshrl.u32 %v767, 7
      %v769 = vsub.s32 2, %v768
      %v770 = vrot.slane %v758, %v769
      %v771 = vlaneseq
      %v772 = vshrl.u32 %v771, 7
      %v773 = vsub.s32 3, %v772
      %v774 = vrot.slane %v758, %v773
      %vm775 = vcmp.eq.s32.totalorder %v762, 1
      %vm776 = vcmp.eq.s32.totalorder %v766, 1
      %vm777 = vcmp.eq.s32.totalorder %v770, 1
      %vm778 = vcmp.eq.s32.totalorder %v774, 1
      %v779 = vsel %vm775, %v756, 0.0
      %v780 = vsel %vm776, %v755, 0.0
      %v781 = vsel %vm777, %v754, 0.0
      %v782 = vsel %vm778, %v757, 0.0
      %783 = vset.pattern.permute.xlu0 5
      %784 = vperm.xlu0 %783, %v527
      %v785 = vpop.permute.xlu0 %784
      %v787 = vmul.f32 %v785, %v779
      %v788 = vmul.f32 %v785, %v780
      %v789 = vmul.f32 %v785, %v781
      %v790 = vmul.f32 %v785, %v782
      %v791 = vadd.f32 %v741, %v787
      %v792 = vadd.f32 %v742, %v788
      %v793 = vadd.f32 %v743, %v789
      %v794 = vadd.f32 %v744, %v790
      %795 = vrot.lane.b32.xlu0 %v514, 113
      %v796 = vpop.permute.xlu0 %795
      %797 = vrot.lane.b32.xlu0 %v515, 113
      %v798 = vpop.permute.xlu0 %797
      %799 = vrot.lane.b32.xlu0 %v516, 113
      %v800 = vpop.permute.xlu0 %799
      %801 = vrot.lane.b32.xlu0 %v517, 113
      %v802 = vpop.permute.xlu0 %801
      %vm803 = vcmp.lt.s32.totalorder %v537, 113
      %v804 = vsel %vm803, %v800, %v802
      %v805 = vsel %vm803, %v798, %v800
      %v806 = vsel %vm803, %v796, %v798
      %v807 = vsel %vm803, %v802, %v796
      %vm808 = vmand %vm522, %vm524
      %v809 = vsel %vm808, 1, 0
      %v810 = vlaneseq
      %v811 = vshrl.u32 %v810, 7
      %v812 = vsub.s32 0, %v811
      %v813 = vrot.slane %v809, %v812
      %v814 = vlaneseq
      %v815 = vshrl.u32 %v814, 7
      %v816 = vsub.s32 1, %v815
      %v817 = vrot.slane %v809, %v816
      %v818 = vlaneseq
      %v819 = vshrl.u32 %v818, 7
      %v820 = vsub.s32 2, %v819
      %v821 = vrot.slane %v809, %v820
      %v822 = vlaneseq
      %v823 = vshrl.u32 %v822, 7
      %v824 = vsub.s32 3, %v823
      %v825 = vrot.slane %v809, %v824
      %vm826 = vcmp.eq.s32.totalorder %v813, 1
      %vm827 = vcmp.eq.s32.totalorder %v817, 1
      %vm828 = vcmp.eq.s32.totalorder %v821, 1
      %vm829 = vcmp.eq.s32.totalorder %v825, 1
      %v830 = vsel %vm826, %v806, 0.0
      %v831 = vsel %vm827, %v805, 0.0
      %v832 = vsel %vm828, %v804, 0.0
      %v833 = vsel %vm829, %v807, 0.0
      %834 = vset.pattern.permute.xlu0 6
      %835 = vperm.xlu0 %834, %v527
      %v836 = vpop.permute.xlu0 %835
      %v838 = vmul.f32 %v836, %v830
      %v839 = vmul.f32 %v836, %v831
      %v840 = vmul.f32 %v836, %v832
      %v841 = vmul.f32 %v836, %v833
      %v842 = vadd.f32 %v791, %v838
      %v843 = vadd.f32 %v792, %v839
      %v844 = vadd.f32 %v793, %v840
      %v845 = vadd.f32 %v794, %v841
      %846 = vrot.lane.b32.xlu0 %v514, 112
      %v847 = vpop.permute.xlu0 %846
      %848 = vrot.lane.b32.xlu0 %v515, 112
      %v849 = vpop.permute.xlu0 %848
      %850 = vrot.lane.b32.xlu0 %v516, 112
      %v851 = vpop.permute.xlu0 %850
      %852 = vrot.lane.b32.xlu0 %v517, 112
      %v853 = vpop.permute.xlu0 %852
      %vm854 = vcmp.lt.s32.totalorder %v537, 112
      %v855 = vsel %vm854, %v851, %v853
      %v856 = vsel %vm854, %v849, %v851
      %v857 = vsel %vm854, %v847, %v849
      %v858 = vsel %vm854, %v853, %v847
      %v859 = vsel %vm522, 1, 0
      %v860 = vlaneseq
      %v861 = vshrl.u32 %v860, 7
      %v862 = vsub.s32 0, %v861
      %v863 = vrot.slane %v859, %v862
      %v864 = vlaneseq
      %v865 = vshrl.u32 %v864, 7
      %v866 = vsub.s32 1, %v865
      %v867 = vrot.slane %v859, %v866
      %v868 = vlaneseq
      %v869 = vshrl.u32 %v868, 7
      %v870 = vsub.s32 2, %v869
      %v871 = vrot.slane %v859, %v870
      %v872 = vlaneseq
      %v873 = vshrl.u32 %v872, 7
      %v874 = vsub.s32 3, %v873
      %v875 = vrot.slane %v859, %v874
      %vm876 = vcmp.eq.s32.totalorder %v863, 1
      %vm877 = vcmp.eq.s32.totalorder %v867, 1
      %vm878 = vcmp.eq.s32.totalorder %v871, 1
      %vm879 = vcmp.eq.s32.totalorder %v875, 1
      %v880 = vsel %vm876, %v857, 0.0
      %v881 = vsel %vm877, %v856, 0.0
      %v882 = vsel %vm878, %v855, 0.0
      %v883 = vsel %vm879, %v858, 0.0
      %884 = vset.pattern.permute.xlu0 7
      %885 = vperm.xlu0 %884, %v527
      %v886 = vpop.permute.xlu0 %885
      %v888 = vmul.f32 %v886, %v880
      %v889 = vmul.f32 %v886, %v881
      %v890 = vmul.f32 %v886, %v882
      %v891 = vmul.f32 %v886, %v883
      %v892 = vadd.f32 %v842, %v888
      %v893 = vadd.f32 %v843, %v889
      %v894 = vadd.f32 %v844, %v890
      %v895 = vadd.f32 %v845, %v891
      %896 = vrot.lane.b32.xlu0 %v514, 111
      %v897 = vpop.permute.xlu0 %896
      %898 = vrot.lane.b32.xlu0 %v515, 111
      %v899 = vpop.permute.xlu0 %898
      %900 = vrot.lane.b32.xlu0 %v516, 111
      %v901 = vpop.permute.xlu0 %900
      %902 = vrot.lane.b32.xlu0 %v517, 111
      %v903 = vpop.permute.xlu0 %902
      %vm904 = vcmp.lt.s32.totalorder %v537, 111
      %v905 = vsel %vm904, %v901, %v903
      %v906 = vsel %vm904, %v899, %v901
      %v907 = vsel %vm904, %v897, %v899
      %v908 = vsel %vm904, %v903, %v897
      %vm909 = vmand %vm522, %vm526
      %v910 = vsel %vm909, 1, 0
      %v911 = vlaneseq
      %v912 = vshrl.u32 %v911, 7
      %v913 = vsub.s32 0, %v912
      %v914 = vrot.slane %v910, %v913
      %v915 = vlaneseq
      %v916 = vshrl.u32 %v915, 7
      %v917 = vsub.s32 1, %v916
      %v918 = vrot.slane %v910, %v917
      %v919 = vlaneseq
      %v920 = vshrl.u32 %v919, 7
      %v921 = vsub.s32 2, %v920
      %v922 = vrot.slane %v910, %v921
      %v923 = vlaneseq
      %v924 = vshrl.u32 %v923, 7
      %v925 = vsub.s32 3, %v924
      %v926 = vrot.slane %v910, %v925
      %vm927 = vcmp.eq.s32.totalorder %v914, 1
      %vm928 = vcmp.eq.s32.totalorder %v918, 1
      %vm929 = vcmp.eq.s32.totalorder %v922, 1
      %vm930 = vcmp.eq.s32.totalorder %v926, 1
      %v931 = vsel %vm927, %v907, 0.0
      %v932 = vsel %vm928, %v906, 0.0
      %v933 = vsel %vm929, %v905, 0.0
      %v934 = vsel %vm930, %v908, 0.0
      %935 = vset.pattern.permute.xlu0 8
      %936 = vperm.xlu0 %935, %v527
      %v937 = vpop.permute.xlu0 %936
      %v939 = vmul.f32 %v937, %v931
      %v940 = vmul.f32 %v937, %v932
      %v941 = vmul.f32 %v937, %v933
      %v942 = vmul.f32 %v937, %v934
      %v943 = vadd.f32 %v892, %v939
      %v944 = vadd.f32 %v893, %v940
      %v945 = vadd.f32 %v894, %v941
      %v946 = vadd.f32 %v895, %v942
      %948 = vset.pattern.permute.xlu0 0
      %949 = vperm.xlu0 %948, %v397
      %v950 = vpop.permute.xlu0 %949
      %v952 = vadd.f32 %v943, %v950
      %v953 = vadd.f32 %v944, %v950
      %v954 = vadd.f32 %v945, %v950
      %v955 = vadd.f32 %v946, %v950
      %v956 = vld [vmem:[%s4] sm:$0xff]
      %v957 = vld [vmem:[%s4 + $0x8] sm:$0xff]
      %v958 = vld [vmem:[%s5] sm:$0xff]
      %v959 = vld [vmem:[%s5 + $0x8] sm:$0xff]
      %v960 = vld [vmem:[%s6] sm:$0xf]
      %v961 = vunpack.c.l.bf16 %v960
      %v962 = vld [vmem:[%s7] sm:$0xf]
      %v963 = vunpack.c.l.bf16 %v962
      %v964 = vlaneseq
      %v965 = vshrl.u32 %v964, 7
      %v966 = vadd.s32 %v965, 8
      %vm967 = vcmp.eq.s32.totalorder %v965, %v537
      %vm968 = vcmp.eq.s32.totalorder %v966, %v537
      %v969 = vadd.f32 %v514, %v515
      %970 = vadd.xlane.f32.xlu0 %v969
      %v971 = vpop.xlane.xlu0 %970
      %v972 = vmul.f32 %v971, 0.00390625
      %v973 = vadd.f32 %v952, %v953
      %974 = vadd.xlane.f32.xlu0 %v973
      %v975 = vpop.xlane.xlu0 %974
      %v976 = vmul.f32 %v975, 0.00390625
      %978 = vset.pattern.permute.xlu0 0
      %979 = vperm.xlu0 %978, %v972
      %v980 = vpop.permute.xlu0 %979
      %983 = vset.pattern.permute.xlu0 0
      %984 = vperm.xlu0 %983, %v976
      %v985 = vpop.permute.xlu0 %984
      %v987 = vmul.f32 %v956, %v980
      %v988 = vmul.f32 %v957, %v985
      %vm989 = vcmask 31744
      %v990 = vsel %vm989, %v987, 0.0
      %v991 = vsel %vm989, %v988, 0.0
      %v992 = vadd.f32 %v990, %v991
      %v993 = vrot.slane %v992, 4
      %v994 = vadd.f32 %v992, %v993
      %v995 = vrot.slane %v994, 2
      %v996 = vadd.f32 %v994, %v995
      %v997 = vrot.slane %v996, 1
      %v998 = vadd.f32 %v996, %v997
      %v999 = vadd.f32 %v998, %v398
      %v1000 = vmax.f32 %v999, 0.0
      %v1001 = vlaneseq
      %v1002 = vshrl.u32 %v1001, 7
      %v1003 = vsub.s32 0, %v1002
      %v1004 = vrot.slane %v1000, %v1003
      %v1005 = vmul.f32 %v958, %v1004
      %v1006 = vmul.f32 %v959, %v1004
      %v1007 = vsel %vm989, %v1005, 0.0
      %1008 = vadd.xlane.f32.xlu0 %v1007
      %v1009 = vpop.xlane.xlu0 %1008
      %v1010 = vsel %vm989, %v1006, 0.0
      %1011 = vadd.xlane.f32.xlu0 %v1010
      %v1012 = vpop.xlane.xlu0 %1011
      %v1013 = vadd.f32 %v1009, %v396
      %v1014 = vadd.f32 %v1012, %v397
      %v1015 = vmul.f32 %v1013, 0.16666667
      %v1016 = vmul.f32 %v1014, 0.16666667
      %v1017 = vadd.f32 %v1015, 0.5
      %v1018 = vadd.f32 %v1016, 0.5
      %v1019 = vmax.f32 %v1017, 0.0
      %v1020 = vmax.f32 %v1018, 0.0
      %v1021 = vmin.f32 %v1019, 1.0
      %v1022 = vmin.f32 %v1020, 1.0
      %1024 = vset.pattern.permute.xlu0 1
      %1025 = vperm.xlu0 %1024, %v1021
      %v1026 = vpop.permute.xlu0 %1025
      %1029 = vset.pattern.permute.xlu0 1
      %1030 = vperm.xlu0 %1029, %v1022
      %v1031 = vpop.permute.xlu0 %1030
      %v1033 = vsel %vm967, %v1026, 0.0
      %v1034 = vsel %vm968, %v1031, 0.0
      %vm1035 = vcmask 130048
      %v1036 = vsel %vm1035, %v1033, 0.0
      %v1037 = vsel %vm1035, %v1034, 0.0
      %v1038 = vadd.f32 %v1036, %v1037
      %v1039 = vrot.slane %v1038, 4
      %v1040 = vadd.f32 %v1038, %v1039
      %v1041 = vrot.slane %v1040, 2
      %v1042 = vadd.f32 %v1040, %v1041
      %v1043 = vrot.slane %v1042, 1
      %v1044 = vadd.f32 %v1042, %v1043
      %v1045 = vmul.f32 %v961, %v1044
      %v1046 = vpack.c.bf16 %v1045, %v1045
      %1048 = vrot.lane.b32.xlu0 %v1044, 120
      %v1049 = vpop.permute.xlu0 %1048
      %v1051 = vmul.f32 %v963, %v1049
      %v1052 = vpack.c.bf16 %v1051, %v1051
      %v1053 = vpack.c.bf16 %v514, %v514
      %v1054 = vpack.c.bf16 %v515, %v515
      %v1055 = vpack.c.bf16 %v952, %v952
      %v1056 = vpack.c.bf16 %v953, %v953
      %v1058 = vsel %vm415, %v1052, 0
      %v1061 = vsel %vm419, %v1055, 0
      %v1064 = vsel %vm419, %v1056, 0
      %1066 = vmatprep.subr.bf16.mxu0 %v1064
      %1067 = vmatpush1.bf16.msra.mxu0 %v1061
      %1068 = vmatprep.subr.bf16.mxu0 0
      %1069 = vmatpush1.bf16.msra.mxu0 0
      %1070 = vmatprep.subr.bf16.mxu0 0
      %1071 = vmatpush1.bf16.msra.mxu0 0
      %1072 = vmatprep.subr.bf16.mxu0 0
      %1073 = vmatpush1.bf16.msra.mxu0 0
      %1074 = vmatprep.subr.bf16.mxu0 0
      %1075 = vmatpush1.bf16.msra.mxu0 0
      %1076 = vmatprep.subr.bf16.mxu0 0
      %1077 = vmatpush1.bf16.msra.mxu0 0
      %1078 = vmatprep.subr.bf16.mxu0 0
      %1079 = vmatpush1.bf16.msra.mxu0 0
      %1080 = vmatprep.subr.bf16.mxu0 0
      %1081 = vmatpush1.bf16.msra.mxu0 0
      %1082 = vmatprep.subr.bf16.mxu0 0
      %1083 = vmatpush1.bf16.msra.mxu0 0
      %1084 = vmatprep.subr.bf16.mxu0 0
      %1085 = vmatpush1.bf16.msra.mxu0 0
      %1086 = vmatprep.subr.bf16.mxu0 0
      %1087 = vmatpush1.bf16.msra.mxu0 0
      %1088 = vmatprep.subr.bf16.mxu0 0
      %1089 = vmatpush1.bf16.msra.mxu0 0
      %1090 = vmatprep.subr.bf16.mxu0 0
      %1091 = vmatpush1.bf16.msra.mxu0 0
      %1092 = vmatprep.subr.bf16.mxu0 0
      %1093 = vmatpush1.bf16.msra.mxu0 0
      %1094 = vmatprep.subr.bf16.mxu0 0
      %1095 = vmatpush1.bf16.msra.mxu0 0
      %1096 = vmatprep.subr.bf16.mxu0 0
      %1097 = vmatpush1.bf16.msra.mxu0 0
      %1098 = vmatprep.mubr.bf16.mxu0 0
      %1099 = vmatmul.mubr.bf16.gmra.mrb[0].mxu0 %v1058
      %v1100 = vpop.f32.mrb[0].mxu0
      %v1101 = vadd.f32 0.0, %v1100
      %v1102 = vpop.f32.mrb[0].mxu0
      %v1103 = vadd.f32 0.0, %v1102
      %v1104 = vpop.f32.mrb[0].mxu0
      %v1105 = vpop.f32.mrb[0].mxu0
      %1106 = vdwg.mxu0
      %v1108 = vsel %vm415, %v1046, 0
      %v1111 = vsel %vm419, %v1053, 0
      %v1114 = vsel %vm419, %v1054, 0
      %1116 = vmatprep.subr.bf16.mxu0 %v1114
      %1117 = vmatpush1.bf16.msra.mxu0 %v1111
      %1118 = vmatprep.subr.bf16.mxu0 0
      %1119 = vmatpush1.bf16.msra.mxu0 0
      %1120 = vmatprep.subr.bf16.mxu0 0
      %1121 = vmatpush1.bf16.msra.mxu0 0
      %1122 = vmatprep.subr.bf16.mxu0 0
      %1123 = vmatpush1.bf16.msra.mxu0 0
      %1124 = vmatprep.subr.bf16.mxu0 0
      %1125 = vmatpush1.bf16.msra.mxu0 0
      %1126 = vmatprep.subr.bf16.mxu0 0
      %1127 = vmatpush1.bf16.msra.mxu0 0
      %1128 = vmatprep.subr.bf16.mxu0 0
      %1129 = vmatpush1.bf16.msra.mxu0 0
      %1130 = vmatprep.subr.bf16.mxu0 0
      %1131 = vmatpush1.bf16.msra.mxu0 0
      %1132 = vmatprep.subr.bf16.mxu0 0
      %1133 = vmatpush1.bf16.msra.mxu0 0
      %1134 = vmatprep.subr.bf16.mxu0 0
      %1135 = vmatpush1.bf16.msra.mxu0 0
      %1136 = vmatprep.subr.bf16.mxu0 0
      %1137 = vmatpush1.bf16.msra.mxu0 0
      %1138 = vmatprep.subr.bf16.mxu0 0
      %1139 = vmatpush1.bf16.msra.mxu0 0
      %1140 = vmatprep.subr.bf16.mxu0 0
      %1141 = vmatpush1.bf16.msra.mxu0 0
      %1142 = vmatprep.subr.bf16.mxu0 0
      %1143 = vmatpush1.bf16.msra.mxu0 0
      %1144 = vmatprep.subr.bf16.mxu0 0
      %1145 = vmatpush1.bf16.msra.mxu0 0
      %1146 = vmatprep.subr.bf16.mxu0 0
      %1147 = vmatpush1.bf16.msra.mxu0 0
      %1148 = vmatprep.mubr.bf16.mxu0 0
      %1149 = vmatmul.mubr.bf16.gmra.mrb[0].mxu0 %v1108
      %v1150 = vpop.f32.mrb[0].mxu0
      %v1151 = vadd.f32 %v1101, %v1150
      %v1152 = vpop.f32.mrb[0].mxu0
      %v1153 = vadd.f32 %v1103, %v1152
      %v1154 = vpop.f32.mrb[0].mxu0
      %v1155 = vpop.f32.mrb[0].mxu0
      %1156 = vdwg.mxu0
      %1158 = vset.pattern.permute.xlu0 0
      %1159 = vperm.xlu0 %1158, %v399
      %v1160 = vpop.permute.xlu0 %1159
      %v1162 = vadd.f32 %v1151, %v1160
      %v1163 = vadd.f32 %v1153, %v1160
      %v1164 = vmax.f32 %v1162, 0.0
      %v1165 = vmax.f32 %v1163, 0.0
      %v1166 = vld [vmem:[%s386] sm:$0xff]
      %v1167 = vld [vmem:[%s386 + $0x8] sm:$0xff]
      %1168 = vst [vmem:[%s393] sm:$0xff] %v1166
      %1169 = vst [vmem:[%s393 + $0x8] sm:$0xff] %v1167
      %1170 = vst [vmem:[%s393 + $0x10] sm:$0xff] %v1164
      %1171 = vst [vmem:[%s393 + $0x18] sm:$0xff] %v1165
      %v1172 = vadd.f32 %v516, %v517
      %1173 = vadd.xlane.f32.xlu0 %v1172
      %v1174 = vpop.xlane.xlu0 %1173
      %v1175 = vmul.f32 %v1174, 0.00390625
      %v1176 = vadd.f32 %v954, %v955
      %1177 = vadd.xlane.f32.xlu0 %v1176
      %v1178 = vpop.xlane.xlu0 %1177
      %v1179 = vmul.f32 %v1178, 0.00390625
      %1181 = vset.pattern.permute.xlu0 0
      %1182 = vperm.xlu0 %1181, %v1175
      %v1183 = vpop.permute.xlu0 %1182
      %1186 = vset.pattern.permute.xlu0 0
      %1187 = vperm.xlu0 %1186, %v1179
      %v1188 = vpop.permute.xlu0 %1187
      %v1190 = vmul.f32 %v956, %v1183
      %v1191 = vmul.f32 %v957, %v1188
      %v1192 = vsel %vm989, %v1190, 0.0
      %v1193 = vsel %vm989, %v1191, 0.0
      %v1194 = vadd.f32 %v1192, %v1193
      %v1195 = vrot.slane %v1194, 4
      %v1196 = vadd.f32 %v1194, %v1195
      %v1197 = vrot.slane %v1196, 2
      %v1198 = vadd.f32 %v1196, %v1197
      %v1199 = vrot.slane %v1198, 1
      %v1200 = vadd.f32 %v1198, %v1199
      %v1201 = vadd.f32 %v1200, %v398
      %v1202 = vmax.f32 %v1201, 0.0
      %v1203 = vlaneseq
      %v1204 = vshrl.u32 %v1203, 7
      %v1205 = vsub.s32 0, %v1204
      %v1206 = vrot.slane %v1202, %v1205
      %v1207 = vmul.f32 %v958, %v1206
      %v1208 = vmul.f32 %v959, %v1206
      %v1209 = vsel %vm989, %v1207, 0.0
      %1210 = vadd.xlane.f32.xlu0 %v1209
      %v1211 = vpop.xlane.xlu0 %1210
      %v1212 = vsel %vm989, %v1208, 0.0
      %1213 = vadd.xlane.f32.xlu0 %v1212
      %v1214 = vpop.xlane.xlu0 %1213
      %v1215 = vadd.f32 %v1211, %v396
      %v1216 = vadd.f32 %v1214, %v397
      %v1217 = vmul.f32 %v1215, 0.16666667
      %v1218 = vmul.f32 %v1216, 0.16666667
      %v1219 = vadd.f32 %v1217, 0.5
      %v1220 = vadd.f32 %v1218, 0.5
      %v1221 = vmax.f32 %v1219, 0.0
      %v1222 = vmax.f32 %v1220, 0.0
      %v1223 = vmin.f32 %v1221, 1.0
      %v1224 = vmin.f32 %v1222, 1.0
      %1226 = vset.pattern.permute.xlu0 1
      %1227 = vperm.xlu0 %1226, %v1223
      %v1228 = vpop.permute.xlu0 %1227
      %1231 = vset.pattern.permute.xlu0 1
      %1232 = vperm.xlu0 %1231, %v1224
      %v1233 = vpop.permute.xlu0 %1232
      %v1235 = vsel %vm967, %v1228, 0.0
      %v1236 = vsel %vm968, %v1233, 0.0
      %v1237 = vsel %vm1035, %v1235, 0.0
      %v1238 = vsel %vm1035, %v1236, 0.0
      %v1239 = vadd.f32 %v1237, %v1238
      %v1240 = vrot.slane %v1239, 4
      %v1241 = vadd.f32 %v1239, %v1240
      %v1242 = vrot.slane %v1241, 2
      %v1243 = vadd.f32 %v1241, %v1242
      %v1244 = vrot.slane %v1243, 1
      %v1245 = vadd.f32 %v1243, %v1244
      %v1246 = vmul.f32 %v961, %v1245
      %v1247 = vpack.c.bf16 %v1246, %v1246
      %1249 = vrot.lane.b32.xlu0 %v1245, 120
      %v1250 = vpop.permute.xlu0 %1249
      %v1252 = vmul.f32 %v963, %v1250
      %v1253 = vpack.c.bf16 %v1252, %v1252
      %v1254 = vpack.c.bf16 %v516, %v516
      %v1255 = vpack.c.bf16 %v517, %v517
      %v1256 = vpack.c.bf16 %v954, %v954
      %v1257 = vpack.c.bf16 %v955, %v955
      %v1259 = vsel %vm415, %v1253, 0
      %v1262 = vsel %vm419, %v1256, 0
      %v1265 = vsel %vm419, %v1257, 0
      %1267 = vmatprep.subr.bf16.mxu0 %v1265
      %1268 = vmatpush1.bf16.msra.mxu0 %v1262
      %1269 = vmatprep.subr.bf16.mxu0 0
      %1270 = vmatpush1.bf16.msra.mxu0 0
      %1271 = vmatprep.subr.bf16.mxu0 0
      %1272 = vmatpush1.bf16.msra.mxu0 0
      %1273 = vmatprep.subr.bf16.mxu0 0
      %1274 = vmatpush1.bf16.msra.mxu0 0
      %1275 = vmatprep.subr.bf16.mxu0 0
      %1276 = vmatpush1.bf16.msra.mxu0 0
      %1277 = vmatprep.subr.bf16.mxu0 0
      %1278 = vmatpush1.bf16.msra.mxu0 0
      %1279 = vmatprep.subr.bf16.mxu0 0
      %1280 = vmatpush1.bf16.msra.mxu0 0
      %1281 = vmatprep.subr.bf16.mxu0 0
      %1282 = vmatpush1.bf16.msra.mxu0 0
      %1283 = vmatprep.subr.bf16.mxu0 0
      %1284 = vmatpush1.bf16.msra.mxu0 0
      %1285 = vmatprep.subr.bf16.mxu0 0
      %1286 = vmatpush1.bf16.msra.mxu0 0
      %1287 = vmatprep.subr.bf16.mxu0 0
      %1288 = vmatpush1.bf16.msra.mxu0 0
      %1289 = vmatprep.subr.bf16.mxu0 0
      %1290 = vmatpush1.bf16.msra.mxu0 0
      %1291 = vmatprep.subr.bf16.mxu0 0
      %1292 = vmatpush1.bf16.msra.mxu0 0
      %1293 = vmatprep.subr.bf16.mxu0 0
      %1294 = vmatpush1.bf16.msra.mxu0 0
      %1295 = vmatprep.subr.bf16.mxu0 0
      %1296 = vmatpush1.bf16.msra.mxu0 0
      %1297 = vmatprep.subr.bf16.mxu0 0
      %1298 = vmatpush1.bf16.msra.mxu0 0
      %1299 = vmatprep.mubr.bf16.mxu0 0
      %1300 = vmatmul.mubr.bf16.gmra.mrb[0].mxu0 %v1259
      %v1301 = vpop.f32.mrb[0].mxu0
      %v1302 = vadd.f32 0.0, %v1301
      %v1303 = vpop.f32.mrb[0].mxu0
      %v1304 = vadd.f32 0.0, %v1303
      %v1305 = vpop.f32.mrb[0].mxu0
      %v1306 = vpop.f32.mrb[0].mxu0
      %1307 = vdwg.mxu0
      %v1309 = vsel %vm415, %v1247, 0
      %v1312 = vsel %vm419, %v1254, 0
      %v1315 = vsel %vm419, %v1255, 0
      %1317 = vmatprep.subr.bf16.mxu0 %v1315
      %1318 = vmatpush1.bf16.msra.mxu0 %v1312
      %1319 = vmatprep.subr.bf16.mxu0 0
      %1320 = vmatpush1.bf16.msra.mxu0 0
      %1321 = vmatprep.subr.bf16.mxu0 0
      %1322 = vmatpush1.bf16.msra.mxu0 0
      %1323 = vmatprep.subr.bf16.mxu0 0
      %1324 = vmatpush1.bf16.msra.mxu0 0
      %1325 = vmatprep.subr.bf16.mxu0 0
      %1326 = vmatpush1.bf16.msra.mxu0 0
      %1327 = vmatprep.subr.bf16.mxu0 0
      %1328 = vmatpush1.bf16.msra.mxu0 0
      %1329 = vmatprep.subr.bf16.mxu0 0
      %1330 = vmatpush1.bf16.msra.mxu0 0
      %1331 = vmatprep.subr.bf16.mxu0 0
      %1332 = vmatpush1.bf16.msra.mxu0 0
      %1333 = vmatprep.subr.bf16.mxu0 0
      %1334 = vmatpush1.bf16.msra.mxu0 0
      %1335 = vmatprep.subr.bf16.mxu0 0
      %1336 = vmatpush1.bf16.msra.mxu0 0
      %1337 = vmatprep.subr.bf16.mxu0 0
      %1338 = vmatpush1.bf16.msra.mxu0 0
      %1339 = vmatprep.subr.bf16.mxu0 0
      %1340 = vmatpush1.bf16.msra.mxu0 0
      %1341 = vmatprep.subr.bf16.mxu0 0
      %1342 = vmatpush1.bf16.msra.mxu0 0
      %1343 = vmatprep.subr.bf16.mxu0 0
      %1344 = vmatpush1.bf16.msra.mxu0 0
      %1345 = vmatprep.subr.bf16.mxu0 0
      %1346 = vmatpush1.bf16.msra.mxu0 0
      %1347 = vmatprep.subr.bf16.mxu0 0
      %1348 = vmatpush1.bf16.msra.mxu0 0
      %1349 = vmatprep.mubr.bf16.mxu0 0
      %1350 = vmatmul.mubr.bf16.gmra.mrb[0].mxu0 %v1309
      %v1351 = vpop.f32.mrb[0].mxu0
      %v1352 = vadd.f32 %v1302, %v1351
      %v1353 = vpop.f32.mrb[0].mxu0
      %v1354 = vadd.f32 %v1304, %v1353
      %v1355 = vpop.f32.mrb[0].mxu0
      %v1356 = vpop.f32.mrb[0].mxu0
      %1357 = vdwg.mxu0
      %v1358 = vadd.f32 %v1352, %v1160
      %v1359 = vadd.f32 %v1354, %v1160
      %v1360 = vmax.f32 %v1358, 0.0
      %v1361 = vmax.f32 %v1359, 0.0
      %v1362 = vld [vmem:[%s402] sm:$0xff]
      %v1363 = vld [vmem:[%s402 + $0x8] sm:$0xff]
      %s1364 = scalar_lea.vmem %s393, 32
      %1365 = vst [vmem:[%s1364] sm:$0xff] %v1362
      %1366 = vst [vmem:[%s1364 + $0x8] sm:$0xff] %v1363
      %1367 = vst [vmem:[%s1364 + $0x10] sm:$0xff] %v1360
      %1368 = vst [vmem:[%s1364 + $0x18] sm:$0xff] %v1361
      %s1369 = smul.u32 2, %s22
      %p1370 = scmp.lt.s32.totalorder %s1369, 3
      %s1371 = scalar_select %p1370, %s1369, 3
      %s1372 = smul.addr %s1371, 4
      %s1373 = smul.addr %s1372, 8
      %s1374 = scalar_lea.vmem %s11, %s1373
      // Predicated region
      $region65: #{inverted_residual.1} parent=63 // pred_check
        %p1375 = pneg %p276
      $region66: #{inverted_residual.1} parent=63 // pred_check_branch
        %1377 = sbr.rel (%p1375) target = $region68
      $region67: #{inverted_residual.1} parent=63 // pred_region
        %s1378 = smul.u32 2, %s22
      $region68: #{inverted_residual.1} parent=63 // pred_fallthru
        _
    $region64: #{inverted_residual.1} parent=5 // pred_fallthru
      _
    %p1379 = scmp.le.s32.totalorder 2, %s17
    // Predicated region
    $region69: #{inverted_residual.1} parent=5 // pred_check
      %p1380 = pneg %p1379
    $region70: #{inverted_residual.1} parent=5 // pred_check_branch
      %1382 = sbr.rel (%p1380) target = $region72
    $region71: #{inverted_residual.1} parent=5 // pred_region
      %s1383 = ssub.s32 %s17, 2
      // Predicated region
      $region73: #{inverted_residual.1} parent=71 // pred_check
        %p1384 = pneg %p282
      $region74: #{inverted_residual.1} parent=71 // pred_check_branch
        %1386 = sbr.rel (%p1384) target = $region76
      $region75: #{inverted_residual.1} parent=71 // pred_region
        %s1387 = smul.u32 2, %s23
        %p1388 = scmp.lt.s32.totalorder %s1387, 3
        %s1389 = scalar_select %p1388, %s1387, 3
        %s1390 = smul.addr %s1389, 4
        %s1391 = smul.addr %s1390, 8
        %s1392 = scalar_lea.vmem %s11, %s1391
      $region76: #{inverted_residual.1} parent=71 // pred_fallthru
        _
    $region72: #{inverted_residual.1} parent=5 // pred_fallthru
      _
  $region6: #{inverted_residual.1} parent=0 // loop_footer
    %s21 = sadd.s32 1, %s17
  $region7: #{inverted_residual.1} parent=0 // loop_footer_branch
    %16 = sbr.rel target = $region3
  $region8: #{inverted_residual.1} parent=0 // loop_exit
    _

</llo_original>
